<compile_context>
chip_gen: v7x
topology: tpu7x:2x2x1
jax: 0.10.0
libtpu: 0.0.40
codegen_flags: <defaults>
</compile_context>

<pallas_src>
import functools

import jax
import jax.numpy as jnp
from jax import lax
from jax.experimental import pallas as pl
from jax.experimental.pallas import tpu as pltpu


# ---------------------------------------------------------------------------
# Pallas kernel: one batch tile computes gate + all experts + weighted sum.
# ---------------------------------------------------------------------------
def _moe_block_kernel(x_ref, ln_g_ref, ln_b_ref, gate_w_ref,
                      w0_ref, w1_ref, wo_ref, theta_ref,
                      *, top_k, n_experts, h1_size):
    # ---- gate: LayerNorm -> Linear(no bias) -> top-k masked softmax (f32) ----
    x = x_ref[...]                                            # [TB, I] f32
    inv_i = 1.0 / x.shape[-1]
    s1 = jnp.sum(x, axis=-1, keepdims=True)                   # fused single-pass
    s2 = jnp.sum(x * x, axis=-1, keepdims=True)               # LN statistics
    mu = s1 * inv_i
    var = s2 * inv_i - mu * mu
    xn = (x - mu) * lax.rsqrt(var + 1e-5)
    xn = xn * ln_g_ref[...] + ln_b_ref[...]
    logits = jnp.dot(xn, gate_w_ref[...],
                     preferred_element_type=jnp.float32)      # [TB, E]

    # k-th largest logit per row (keeps ties, see header note)
    masked = logits
    thresh = logits
    for _ in range(top_k):
        thresh = jnp.max(masked, axis=-1, keepdims=True)
        masked = jnp.where(masked >= thresh, -jnp.inf, masked)
    keep = logits >= thresh
    mlog = jnp.where(keep, logits, -jnp.inf)
    m = jnp.max(mlog, axis=-1, keepdims=True)
    ex = jnp.where(keep, jnp.exp(mlog - m), 0.0)
    gates = ex / jnp.sum(ex, axis=-1, keepdims=True)          # [TB, E] sparse, f32

    # Gate-expansion 0/1 matrix built in-kernel (no extra input DMA).
    # expand[e, j] = 1  iff  e*H1 <= j < (e+1)*H1
    ncols = n_experts * h1_size
    row = lax.broadcasted_iota(jnp.int32, (n_experts, ncols), 0)
    col = lax.broadcasted_iota(jnp.int32, (n_experts, ncols), 1)
    left = row * h1_size
    expand = ((col >= left) & (col < left + h1_size)).astype(jnp.bfloat16)
    # bf16 gates only in the broadcast matmul; routing stayed f32 above.
    g_exp = jnp.dot(gates.astype(jnp.bfloat16), expand,
                    preferred_element_type=jnp.float32)       # [TB, E*H1]

    # ---- fused expert MLP: lane-fused W0 / block-diag W1 / fused Wout ----
    # bf16 MXU operands, f32 accumulation; elementwise math stays f32.
    h0 = jnp.dot(x.astype(jnp.bfloat16), w0_ref[...],
                 preferred_element_type=jnp.float32)          # [TB, E*H0]
    h1 = jnp.maximum(
        jnp.dot(h0.astype(jnp.bfloat16), w1_ref[...],
                preferred_element_type=jnp.float32), 0.0)     # [TB, E*H1]
    # fold the gate into the smaller h1 operand; the Wout matmul then performs
    # the gate-weighted sum over experts.
    h1g = (g_exp * h1).astype(jnp.bfloat16)
    theta_ref[...] = jnp.dot(
        h1g, wo_ref[...],
        preferred_element_type=jnp.float32).astype(theta_ref.dtype)   # [TB, T_pad]


# ---------------------------------------------------------------------------
# ONE-TIME parameter preparation (hoisted out of the forward path).
# ---------------------------------------------------------------------------
def prepare_moe_params(params):
    """Re-lay out expert weights for the fused kernel.  Call once (outside the
    per-step forward); the returned arrays are reused by every forward call."""
    w0, w1, wo = params["w0"], params["w1"], params["wo"]     # [E, ...]
    E, I, H0 = w0.shape
    _, _, H1 = w1.shape
    _, _, T = wo.shape
    T_pad = ((T + 127) // 128) * 128                          # lane-dense output

    # W0: [E, I, H0] -> [I, E*H0]   (expert axis fused into lanes)
    w0_flat = jnp.transpose(w0, (1, 0, 2)).reshape(I, E * H0).astype(jnp.bfloat16)
    # W1: block-diagonal [E*H0, E*H1]
    # TODO(synk): the block-diagonal W1 stores/DMAs/multiplies E x the real
    # weight bytes & FLOPs (scales as E^2*H0*H1).  Fine at E=8, H=64; if E or
    # H grow (esp. under v7x's 64 MiB VMEM) move this stage to an 'arbitrary'
    # expert grid axis (or emit_pipeline) over compact [E, H0, H1] blocks.
    w1_bd = jnp.einsum("ehk,ef->ehfk", w1,
                       jnp.eye(E, dtype=w1.dtype)).reshape(E * H0, E * H1)
    w1_bd = w1_bd.astype(jnp.bfloat16)
    # Wout: [E, H1, T] -> [E*H1, T_pad] (zero-padded lanes sliced in wrapper)
    wo_flat = jnp.pad(wo.reshape(E * H1, T),
                      ((0, 0), (0, T_pad - T))).astype(jnp.bfloat16)

    return {
        "ln_gamma": params["ln_gamma"].astype(jnp.float32),
        "ln_beta": params["ln_beta"].astype(jnp.float32),
        "gate_w": params["gate_w"].astype(jnp.float32),
        "w0_flat": w0_flat,
        "w1_bd": w1_bd,
        "wo_flat": wo_flat,
        "dims": (E, H0, H1, T, T_pad),                        # static ints
    }


# ---------------------------------------------------------------------------
# Forward wrapper: pallas_call + IdentityBasis split/reshape.
# ---------------------------------------------------------------------------
def nbeats_moe_block(x, prepped, *, input_size, top_k, out_features=1,
                     batch_tile=None):
    """Returns (backcast [B, input_size], forecast [B, horizon, out_features])."""
    B, I = x.shape
    assert I == input_size
    E, H0, H1, T, T_pad = prepped["dims"]

    # Batch tile: 256 fills the v6e/v7x MXU and feeds both v7x TensorCores via
    # the "parallel" grid axis; use 128 on v5e.  Clamp / round for small B.
    if batch_tile is None:
        batch_tile = 256
    tb = max(8, min(batch_tile, B))
    tb = (tb // 8) * 8
    n_tiles = pl.cdiv(B, tb)
    B_pad = n_tiles * tb
    x_p = jnp.pad(x, ((0, B_pad - B), (0, 0))) if B_pad != B else x

    kernel = functools.partial(_moe_block_kernel, top_k=top_k,
                               n_experts=E, h1_size=H1)

    theta_pad = pl.pallas_call(
        kernel,
        out_shape=jax.ShapeDtypeStruct((B_pad, T_pad), jnp.float32),
        grid_spec=pltpu.PrefetchScalarGridSpec(
            num_scalar_prefetch=0,
            grid=(n_tiles,),                                   # batch tiles
            in_specs=[
                pl.BlockSpec((tb, I), lambda i: (i, 0)),       # x tile (streams)
                # all weights: constant block index -> stay resident in VMEM,
                # only DMA'd once across the whole grid.  (On v7x one could
                # also mark these pipeline_mode=pl.Buffered(1) to drop the
                # unused second buffer.)
                pl.BlockSpec((1, I), lambda i: (0, 0)),        # ln gamma
                pl.BlockSpec((1, I), lambda i: (0, 0)),        # ln beta
                pl.BlockSpec((I, E), lambda i: (0, 0)),        # gate W
                pl.BlockSpec((I, E * H0), lambda i: (0, 0)),   # fused W0
                pl.BlockSpec((E * H0, E * H1), lambda i: (0, 0)),  # block-diag W1
                pl.BlockSpec((E * H1, T_pad), lambda i: (0, 0)),   # fused Wout
            ],
            out_specs=pl.BlockSpec((tb, T_pad), lambda i: (i, 0)),
        ),
        compiler_params=pltpu.CompilerParams(
            dimension_semantics=("parallel",)),
    )(x_p, prepped["ln_gamma"], prepped["ln_beta"], prepped["gate_w"],
      prepped["w0_flat"], prepped["w1_bd"], prepped["wo_flat"])

    # IdentityBasis (pure indexing — stays as JAX glue in the wrapper).
    theta = theta_pad[:B, :T]
    backcast = theta[:, :input_size]
    forecast = theta[:, input_size:].reshape(B, -1, out_features)
    return backcast, forecast


# ---------------------------------------------------------------------------
# Pure-JAX f32 reference (same math, no Pallas) for the correctness check.
# ---------------------------------------------------------------------------
def nbeats_moe_block_ref(x, params, *, input_size, top_k, out_features=1):
    ln_g, ln_b = params["ln_gamma"][0], params["ln_beta"][0]
    mu = jnp.mean(x, axis=-1, keepdims=True)
    var = jnp.mean((x - mu) ** 2, axis=-1, keepdims=True)
    xn = (x - mu) * lax.rsqrt(var + 1e-5) * ln_g + ln_b
    logits = xn @ params["gate_w"]                              # [B, E]

    masked, thresh = logits, logits
    for _ in range(top_k):
        thresh = jnp.max(masked, axis=-1, keepdims=True)
        masked = jnp.where(masked >= thresh, -jnp.inf, masked)
    keep = logits >= thresh
    mlog = jnp.where(keep, logits, -jnp.inf)
    gates = jax.nn.softmax(mlog, axis=-1)
    gates = jnp.where(keep, gates, 0.0)

    h0 = jnp.einsum("bi,eih->beh", x, params["w0"])
    h1 = jnp.maximum(jnp.einsum("beh,ehk->bek", h0, params["w1"]), 0.0)
    th_e = jnp.einsum("bek,ekt->bet", h1, params["wo"])
    theta = jnp.einsum("be,bet->bt", gates, th_e)
    backcast = theta[:, :input_size]
    forecast = theta[:, input_size:].reshape(theta.shape[0], -1, out_features)
    return backcast, forecast


# ---------------------------------------------------------------------------
# Main
# ---------------------------------------------------------------------------
if __name__ == "__main__":
    # Small, module-consistent shapes.
    B = 16           # batch (16 rows / 8-row tiles -> exercises the batch grid)
    INPUT_SIZE = 64  # lookback window (backcast size)
    HORIZON = 32     # forecast horizon
    OUT_FEATURES = 1
    N_THETA = INPUT_SIZE + HORIZON * OUT_FEATURES
    H0 = H1 = 64     # mlp_units = [[64, 64]]
    E = 8            # nr_experts
    TOP_K = 2

    key = jax.random.PRNGKey(0)
    k_x, k_g, k_w0, k_w1, k_wo = jax.random.split(key, 5)

    x = jax.random.normal(k_x, (B, INPUT_SIZE), dtype=jnp.float32)

    params = {
        # LayerNorm defaults: gamma=1, beta=0
        "ln_gamma": jnp.ones((1, INPUT_SIZE), jnp.float32),
        "ln_beta": jnp.zeros((1, INPUT_SIZE), jnp.float32),
        # gate Linear (no bias): [in, experts]
        "gate_w": 0.05 * jax.random.normal(k_g, (INPUT_SIZE, E), jnp.float32),
        # stacked expert weights (all bias-free)
        "w0": 0.05 * jax.random.normal(k_w0, (E, INPUT_SIZE, H0), jnp.float32),
        "w1": 0.05 * jax.random.normal(k_w1, (E, H0, H1), jnp.float32),
        "wo": 0.05 * jax.random.normal(k_wo, (E, H1, N_THETA), jnp.float32),
    }

    # One-time weight re-layout (NOT part of the per-call forward path).
    prepped = prepare_moe_params(params)
    jax.block_until_ready(prepped["w1_bd"])

    backcast, forecast = nbeats_moe_block(
        x, prepped, input_size=INPUT_SIZE, top_k=TOP_K,
        out_features=OUT_FEATURES, batch_tile=8)
    jax.block_until_ready((backcast, forecast))

    bc_ref, fc_ref = nbeats_moe_block_ref(
        x, params, input_size=INPUT_SIZE, top_k=TOP_K, out_features=OUT_FEATURES)

    assert backcast.shape == (B, INPUT_SIZE)
    assert forecast.shape == (B, HORIZON, OUT_FEATURES)
    # Routing (top-k + softmax) is exact f32; expert matmuls and the gate
    # broadcast use bf16 operands with f32 accumulation -> relaxed tolerance.
    assert jnp.allclose(backcast, bc_ref, atol=1e-2, rtol=1e-2)
    assert jnp.allclose(forecast, fc_ref, atol=1e-2, rtol=1e-2)

    print("KERNEL_OK")
</pallas_src>

<mosaic_0001>
module attributes {stable_mosaic.version = 11 : i64} {
  func.func @_moe_block_kernel(%arg0: i32, %arg1: memref<8x64xf32, #tpu.memory_space<vmem>>, %arg2: memref<1x64xf32, #tpu.memory_space<vmem>>, %arg3: memref<1x64xf32, #tpu.memory_space<vmem>>, %arg4: memref<64x8xf32, #tpu.memory_space<vmem>>, %arg5: memref<64x512xbf16, #tpu.memory_space<vmem>>, %arg6: memref<512x512xbf16, #tpu.memory_space<vmem>>, %arg7: memref<512x128xbf16, #tpu.memory_space<vmem>>, %arg8: memref<8x128xf32, #tpu.memory_space<vmem>>) attributes {dimension_semantics = [#tpu.dimension_semantics<parallel>], iteration_bounds = array<i64: 2>, scalar_prefetch = 0 : i64, scratch_operands = 0 : i64, tpu.core_type = #tpu.core_type<tc>, window_params = [{transform_indices = @transform_0, window_bounds = array<i64: 8, 64>}, {pipeline_mode = #tpu.pipeline_mode<synchronous>, transform_indices = @transform_1, window_bounds = array<i64: 1, 64>}, {pipeline_mode = #tpu.pipeline_mode<synchronous>, transform_indices = @transform_2, window_bounds = array<i64: 1, 64>}, {pipeline_mode = #tpu.pipeline_mode<synchronous>, transform_indices = @transform_3, window_bounds = array<i64: 64, 8>}, {pipeline_mode = #tpu.pipeline_mode<synchronous>, transform_indices = @transform_4, window_bounds = array<i64: 64, 512>}, {pipeline_mode = #tpu.pipeline_mode<synchronous>, transform_indices = @transform_5, window_bounds = array<i64: 512, 512>}, {pipeline_mode = #tpu.pipeline_mode<synchronous>, transform_indices = @transform_6, window_bounds = array<i64: 512, 128>}, {transform_indices = @transform_7, window_bounds = array<i64: 8, 128>}]} {
    %c0 = arith.constant 0 : index
    %c0_0 = arith.constant 0 : index
    %0 = vector.load %arg1[%c0, %c0_0] : memref<8x64xf32, #tpu.memory_space<vmem>>, vector<8x64xf32>
    %cst = arith.constant dense<0.000000e+00> : vector<8xf32>
    %1 = vector.multi_reduction <add>, %0, %cst [1] : vector<8x64xf32> to vector<8xf32>
    %2 = vector.shape_cast %1 : vector<8xf32> to vector<8x1xf32>
    %3 = arith.mulf %0, %0 : vector<8x64xf32>
    %cst_1 = arith.constant dense<0.000000e+00> : vector<8xf32>
    %4 = vector.multi_reduction <add>, %3, %cst_1 [1] : vector<8x64xf32> to vector<8xf32>
    %5 = vector.shape_cast %4 : vector<8xf32> to vector<8x1xf32>
    %cst_2 = arith.constant 1.562500e-02 : f32
    %6 = vector.broadcast %cst_2 : f32 to vector<8x1xf32>
    %7 = arith.mulf %2, %6 : vector<8x1xf32>
    %cst_3 = arith.constant 1.562500e-02 : f32
    %8 = vector.broadcast %cst_3 : f32 to vector<8x1xf32>
    %9 = arith.mulf %5, %8 : vector<8x1xf32>
    %10 = arith.mulf %7, %7 : vector<8x1xf32>
    %11 = arith.subf %9, %10 : vector<8x1xf32>
    %12 = vector.broadcast %7 : vector<8x1xf32> to vector<8x64xf32>
    %13 = arith.subf %0, %12 : vector<8x64xf32>
    %cst_4 = arith.constant 9.99999974E-6 : f32
    %14 = vector.broadcast %cst_4 : f32 to vector<8x1xf32>
    %15 = arith.addf %11, %14 : vector<8x1xf32>
    %16 = math.rsqrt %15 : vector<8x1xf32>
    %17 = vector.broadcast %16 : vector<8x1xf32> to vector<8x64xf32>
    %18 = arith.mulf %13, %17 : vector<8x64xf32>
    %c0_5 = arith.constant 0 : index
    %c0_6 = arith.constant 0 : index
    %19 = vector.load %arg2[%c0_5, %c0_6] : memref<1x64xf32, #tpu.memory_space<vmem>>, vector<1x64xf32>
    %20 = vector.broadcast %19 : vector<1x64xf32> to vector<8x64xf32>
    %21 = arith.mulf %18, %20 : vector<8x64xf32>
    %c0_7 = arith.constant 0 : index
    %c0_8 = arith.constant 0 : index
    %22 = vector.load %arg3[%c0_7, %c0_8] : memref<1x64xf32, #tpu.memory_space<vmem>>, vector<1x64xf32>
    %23 = vector.broadcast %22 : vector<1x64xf32> to vector<8x64xf32>
    %24 = arith.addf %21, %23 : vector<8x64xf32>
    %c0_9 = arith.constant 0 : index
    %c0_10 = arith.constant 0 : index
    %25 = vector.load %arg4[%c0_9, %c0_10] : memref<64x8xf32, #tpu.memory_space<vmem>>, vector<64x8xf32>
    %cst_11 = arith.constant dense<0.000000e+00> : vector<8x8xf32>
    %26 = tpu.matmul %24, %25, %cst_11 {dimension_numbers = #tpu.dot_dimension_numbers<[1], [0], [0], [1], [0, 0, 1, 1], [], []>} : vector<8x64xf32>, vector<64x8xf32>, vector<8x8xf32> -> vector<8x8xf32>
    %cst_12 = arith.constant dense<0xFF800000> : vector<8xf32>
    %27 = vector.multi_reduction <maximumf>, %26, %cst_12 [1] : vector<8x8xf32> to vector<8xf32>
    %28 = vector.shape_cast %27 : vector<8xf32> to vector<8x1xf32>
    %29 = vector.broadcast %28 : vector<8x1xf32> to vector<8x8xf32>
    %30 = arith.cmpf oge, %26, %29 : vector<8x8xf32>
    %cst_13 = arith.constant 0xFF800000 : f32
    %31 = vector.broadcast %cst_13 : f32 to vector<8x8xf32>
    %32 = arith.select %30, %31, %26 : vector<8x8xi1>, vector<8x8xf32>
    %cst_14 = arith.constant dense<0xFF800000> : vector<8xf32>
    %33 = vector.multi_reduction <maximumf>, %32, %cst_14 [1] : vector<8x8xf32> to vector<8xf32>
    %34 = vector.shape_cast %33 : vector<8xf32> to vector<8x1xf32>
    %35 = vector.broadcast %34 : vector<8x1xf32> to vector<8x8xf32>
    %36 = arith.cmpf oge, %26, %35 : vector<8x8xf32>
    %cst_15 = arith.constant 0xFF800000 : f32
    %37 = vector.broadcast %cst_15 : f32 to vector<8x8xf32>
    %38 = arith.select %36, %26, %37 : vector<8x8xi1>, vector<8x8xf32>
    %cst_16 = arith.constant dense<0xFF800000> : vector<8xf32>
    %39 = vector.multi_reduction <maximumf>, %38, %cst_16 [1] : vector<8x8xf32> to vector<8xf32>
    %40 = vector.shape_cast %39 : vector<8xf32> to vector<8x1xf32>
    %41 = vector.broadcast %40 : vector<8x1xf32> to vector<8x8xf32>
    %42 = arith.subf %38, %41 : vector<8x8xf32>
    %43 = math.exp %42 : vector<8x8xf32>
    %cst_17 = arith.constant 0.000000e+00 : f32
    %44 = vector.broadcast %cst_17 : f32 to vector<8x8xf32>
    %45 = arith.select %36, %43, %44 : vector<8x8xi1>, vector<8x8xf32>
    %cst_18 = arith.constant dense<0.000000e+00> : vector<8xf32>
    %46 = vector.multi_reduction <add>, %45, %cst_18 [1] : vector<8x8xf32> to vector<8xf32>
    %47 = vector.shape_cast %46 : vector<8xf32> to vector<8x1xf32>
    %48 = vector.broadcast %47 : vector<8x1xf32> to vector<8x8xf32>
    %49 = arith.divf %45, %48 : vector<8x8xf32>
    %50 = tpu.iota {dimensions = array<i32: 0>} : vector<8x512xi32>
    %51 = tpu.iota {dimensions = array<i32: 1>} : vector<8x512xi32>
    %c64_i32 = arith.constant 64 : i32
    %52 = vector.broadcast %c64_i32 : i32 to vector<8x512xi32>
    %53 = arith.muli %50, %52 : vector<8x512xi32>
    %54 = arith.cmpi sge, %51, %53 : vector<8x512xi32>
    %c64_i32_19 = arith.constant 64 : i32
    %55 = vector.broadcast %c64_i32_19 : i32 to vector<8x512xi32>
    %56 = arith.addi %53, %55 : vector<8x512xi32>
    %57 = arith.cmpi slt, %51, %56 : vector<8x512xi32>
    %58 = arith.andi %54, %57 : vector<8x512xi1>
    %59 = arith.extui %58 : vector<8x512xi1> to vector<8x512xi32>
    %60 = arith.sitofp %59 : vector<8x512xi32> to vector<8x512xf32>
    %61 = arith.truncf %60 : vector<8x512xf32> to vector<8x512xbf16>
    %62 = arith.truncf %49 : vector<8x8xf32> to vector<8x8xbf16>
    %cst_20 = arith.constant dense<0.000000e+00> : vector<8x512xf32>
    %63 = tpu.matmul %62, %61, %cst_20 {dimension_numbers = #tpu.dot_dimension_numbers<[1], [0], [0], [1], [0, 0, 1, 1], [], []>} : vector<8x8xbf16>, vector<8x512xbf16>, vector<8x512xf32> -> vector<8x512xf32>
    %64 = arith.truncf %0 : vector<8x64xf32> to vector<8x64xbf16>
    %c0_21 = arith.constant 0 : index
    %c0_22 = arith.constant 0 : index
    %65 = vector.load %arg5[%c0_21, %c0_22] : memref<64x512xbf16, #tpu.memory_space<vmem>>, vector<64x512xbf16>
    %cst_23 = arith.constant dense<0.000000e+00> : vector<8x512xf32>
    %66 = tpu.matmul %64, %65, %cst_23 {dimension_numbers = #tpu.dot_dimension_numbers<[1], [0], [0], [1], [0, 0, 1, 1], [], []>} : vector<8x64xbf16>, vector<64x512xbf16>, vector<8x512xf32> -> vector<8x512xf32>
    %67 = arith.truncf %66 : vector<8x512xf32> to vector<8x512xbf16>
    %c0_24 = arith.constant 0 : index
    %c0_25 = arith.constant 0 : index
    %68 = vector.load %arg6[%c0_24, %c0_25] : memref<512x512xbf16, #tpu.memory_space<vmem>>, vector<512x512xbf16>
    %cst_26 = arith.constant dense<0.000000e+00> : vector<8x512xf32>
    %69 = tpu.matmul %67, %68, %cst_26 {dimension_numbers = #tpu.dot_dimension_numbers<[1], [0], [0], [1], [0, 0, 1, 1], [], []>} : vector<8x512xbf16>, vector<512x512xbf16>, vector<8x512xf32> -> vector<8x512xf32>
    %cst_27 = arith.constant 0.000000e+00 : f32
    %70 = vector.broadcast %cst_27 : f32 to vector<8x512xf32>
    %71 = arith.maximumf %69, %70 : vector<8x512xf32>
    %72 = arith.mulf %63, %71 : vector<8x512xf32>
    %73 = arith.truncf %72 : vector<8x512xf32> to vector<8x512xbf16>
    %c0_28 = arith.constant 0 : index
    %c0_29 = arith.constant 0 : index
    %74 = vector.load %arg7[%c0_28, %c0_29] : memref<512x128xbf16, #tpu.memory_space<vmem>>, vector<512x128xbf16>
    %cst_30 = arith.constant dense<0.000000e+00> : vector<8x128xf32>
    %75 = tpu.matmul %73, %74, %cst_30 {dimension_numbers = #tpu.dot_dimension_numbers<[1], [0], [0], [1], [0, 0, 1, 1], [], []>} : vector<8x512xbf16>, vector<512x128xbf16>, vector<8x128xf32> -> vector<8x128xf32>
    %c0_31 = arith.constant 0 : index
    %c0_32 = arith.constant 0 : index
    %76 = vector.load %arg8[%c0_31, %c0_32] : memref<8x128xf32, #tpu.memory_space<vmem>>, vector<8x128xf32>
    tpu.vector_store %arg8[%c0_31, %c0_32], %75 {strides = array<i32>} : memref<8x128xf32, #tpu.memory_space<vmem>>, vector<8x128xf32>,
    return
  }
  func.func @transform_0(%arg0: i32) -> (i32, i32) {
    %c0_i32 = arith.constant 0 : i32
    %c0_i32_0 = arith.constant 0 : i32
    return %arg0, %c0_i32 : i32, i32
  }
  func.func @transform_1(%arg0: i32) -> (i32, i32) {
    %c0_i32 = arith.constant 0 : i32
    %c0_i32_0 = arith.constant 0 : i32
    %c0_i32_1 = arith.constant 0 : i32
    return %c0_i32, %c0_i32_0 : i32, i32
  }
  func.func @transform_2(%arg0: i32) -> (i32, i32) {
    %c0_i32 = arith.constant 0 : i32
    %c0_i32_0 = arith.constant 0 : i32
    %c0_i32_1 = arith.constant 0 : i32
    return %c0_i32, %c0_i32_0 : i32, i32
  }
  func.func @transform_3(%arg0: i32) -> (i32, i32) {
    %c0_i32 = arith.constant 0 : i32
    %c0_i32_0 = arith.constant 0 : i32
    %c0_i32_1 = arith.constant 0 : i32
    return %c0_i32, %c0_i32_0 : i32, i32
  }
  func.func @transform_4(%arg0: i32) -> (i32, i32) {
    %c0_i32 = arith.constant 0 : i32
    %c0_i32_0 = arith.constant 0 : i32
    %c0_i32_1 = arith.constant 0 : i32
    return %c0_i32, %c0_i32_0 : i32, i32
  }
  func.func @transform_5(%arg0: i32) -> (i32, i32) {
    %c0_i32 = arith.constant 0 : i32
    %c0_i32_0 = arith.constant 0 : i32
    %c0_i32_1 = arith.constant 0 : i32
    return %c0_i32, %c0_i32_0 : i32, i32
  }
  func.func @transform_6(%arg0: i32) -> (i32, i32) {
    %c0_i32 = arith.constant 0 : i32
    %c0_i32_0 = arith.constant 0 : i32
    %c0_i32_1 = arith.constant 0 : i32
    return %c0_i32, %c0_i32_0 : i32, i32
  }
  func.func @transform_7(%arg0: i32) -> (i32, i32) {
    %c0_i32 = arith.constant 0 : i32
    %c0_i32_0 = arith.constant 0 : i32
    return %arg0, %c0_i32 : i32, i32
  }
}

</mosaic_0001>

<llo_original>
// kernel: tpu_custom_call.1
$region0: #{tpu_custom_call.1}
  #allocation0 [shape = 'u32[]', space=smem, size = 0x4, offset = 0x4, fixed_abs, tag = 'smem constant byte address 0x4 - core index']
  #allocation1 [shape = 'u32[144,128]{1,0:T(1,128)}', space=vmem, size = 0x12000, scoped, tag = 'internal scratch']
  %s0 = inlined_call_operand.vmem [shape: f32[16,64], index: 0, kind: input, shape index: {}]
  %s1 = inlined_call_operand.vmem [shape: f32[1,64], index: 1, kind: input, shape index: {}]
  %s2 = inlined_call_operand.vmem [shape: f32[1,64], index: 2, kind: input, shape index: {}]
  %s3 = inlined_call_operand.vmem [shape: f32[64,8], index: 3, kind: input, shape index: {}]
  %s4 = inlined_call_operand.hbm [shape: bf16[64,512], index: 4, kind: input, shape index: {}]
  %s5 = inlined_call_operand.hbm [shape: bf16[512,512], index: 5, kind: input, shape index: {}]
  %s6 = inlined_call_operand.hbm [shape: bf16[512,128], index: 6, kind: input, shape index: {}]
  %s7 = inlined_call_operand.hbm [shape: f32[16,128], index: 7, kind: output, shape index: {}]
  %s8 = sld [smem:[#allocation0]]
  $region73: #{tpu_custom_call.1} parent=0
    _
  %s10 = ssub.s32 1, %s8
  %s11 = scalar_select 0, %s10, %s8
  $region1: #{tpu_custom_call.1} parent=0
    #allocation2 [shape = 'u8[65536]{0}', space=vmem, size = 0x10000, scoped, tag = 'input window, operand 4, single buffered']
    #allocation3 [shape = 's32[2]{0}', space=sflag, size = 0x8, scoped, tag = 'scoped memory for tpu_custom_call.1']
    #allocation4 [shape = 's32[2]{0}', space=sflag, size = 0x8, scoped, tag = 'scoped memory for tpu_custom_call.1']
    #allocation5 [shape = 'u8[524288]{0}', space=vmem, size = 0x80000, scoped, tag = 'input window, operand 5, single buffered']
    #allocation6 [shape = 's32[1]{0}', space=sflag, size = 0x4, scoped, tag = 'scoped memory for tpu_custom_call.1']
    #allocation7 [shape = 'u8[131072]{0}', space=vmem, size = 0x20000, scoped, tag = 'input window, operand 6, single buffered']
    #allocation8 [shape = 'u8[8192]{0}', space=vmem, size = 0x2000, scoped, tag = 'output window, operand 0']
    %12 = vsyncpa [#allocation3], 0
    %13 = vsyncpa [#allocation6], 0
    %14 = vsyncpa [#allocation4], 0
    %s15 = scalar_lea.sflag [#allocation4], 1
    %16 = vsyncpa %s15, 0
    loop: start=0, step=1, limit=4
    $region2: #{tpu_custom_call.1} parent=1 // loop_pre_header
      _
    $region3: #{tpu_custom_call.1} parent=1 // loop_header
      %s18 = sphi 0, %s22
      %p19 = scmp.ge.s32.totalorder %s18, 4
      %s28 = sphi 0, %s30
      %s31 = sphi 0, %s28
      %s32 = sphi 0, %s31
      %s48 = sphi 0, %s32
      %s52 = sphi 0, %s52
      %s54 = sphi 0, %s52
      %s55 = sphi 0, %s54
      %s69 = sphi 0, %s55
      %s73 = sphi 0, %s73
      %s75 = sphi 0, %s73
      %s76 = sphi 0, %s75
      %s90 = sphi 0, %s76
      %s94 = sphi 0, %s94
      %s96 = sphi 0, %s94
      %s97 = sphi 0, %s96
      %s111 = sphi 0, %s97
      %s115 = sphi 0, %s115
      %s117 = sphi 0, %s115
      %s118 = sphi 0, %s117
      %s132 = sphi 0, %s118
      %s136 = sphi 0, %s136
      %s138 = sphi 0, %s136
      %s139 = sphi 0, %s138
      %s153 = sphi 0, %s139
      %s157 = sphi 0, %s157
      %s159 = sphi 0, %s157
      %s160 = sphi 0, %s159
      %s174 = sphi 0, %s160
      %s180 = sphi 0, %s182
      %s183 = sphi 0, %s180
      %s184 = sphi 0, %s183
      %s200 = sphi 0, %s184
    $region4: #{tpu_custom_call.1} parent=1 // loop_header_branch
      %21 = sbr.rel (%p19) target = $region8
    $region5: #{tpu_custom_call.1} parent=1 // loop_body
      %s23 = ssub.s32 %s18, 1
      %s24 = ssub.s32 %s18, 2
      %s25 = sadd.s32 %s18, 1
      %s26 = ssub.s32 %s18, %s25
      %p27 = scmp.eq.s32.totalorder %s26, 0
      %s29 = sadd.s32 %s28, 1
      %s30 = scalar_select %p27, %s28, %s29
      %p33 = pneg %p27
      %p34 = scmp.eq.s32.totalorder %s18, 1
      %p35 = por %p33, %p34
      %p36 = scmp.ne.s32.totalorder %s28, %s31
      %p37 = scmp.eq.s32.totalorder %s18, 0
      %p38 = por %p36, %p37
      %p39 = scmp.ne.s32.totalorder %s28, %s31
      %p40 = scmp.eq.s32.totalorder %s23, 1
      %p41 = por %p39, %p40
      %p42 = scmp.ne.s32.totalorder %s31, %s32
      %p43 = scmp.eq.s32.totalorder %s23, 0
      %p44 = por %p42, %p43
      %p45 = scmp.ne.s32.totalorder %s31, %s32
      %p46 = scmp.eq.s32.totalorder %s24, 1
      %p47 = por %p45, %p46
      %p49 = scmp.ne.s32.totalorder %s32, %s48
      %p50 = scmp.eq.s32.totalorder %s24, 0
      %p51 = por %p49, %p50
      %s53 = sadd.s32 %s52, 1
      %p56 = scmp.eq.s32.totalorder %s18, 1
      %p57 = scmp.ne.s32.totalorder %s52, %s54
      %p58 = scmp.eq.s32.totalorder %s18, 0
      %p59 = por %p57, %p58
      %p60 = scmp.ne.s32.totalorder %s52, %s54
      %p61 = scmp.eq.s32.totalorder %s23, 1
      %p62 = por %p60, %p61
      %p63 = scmp.ne.s32.totalorder %s54, %s55
      %p64 = scmp.eq.s32.totalorder %s23, 0
      %p65 = por %p63, %p64
      %p66 = scmp.ne.s32.totalorder %s54, %s55
      %p67 = scmp.eq.s32.totalorder %s24, 1
      %p68 = por %p66, %p67
      %p70 = scmp.ne.s32.totalorder %s55, %s69
      %p71 = scmp.eq.s32.totalorder %s24, 0
      %p72 = por %p70, %p71
      %s74 = sadd.s32 %s73, 1
      %p77 = scmp.eq.s32.totalorder %s18, 1
      %p78 = scmp.ne.s32.totalorder %s73, %s75
      %p79 = scmp.eq.s32.totalorder %s18, 0
      %p80 = por %p78, %p79
      %p81 = scmp.ne.s32.totalorder %s73, %s75
      %p82 = scmp.eq.s32.totalorder %s23, 1
      %p83 = por %p81, %p82
      %p84 = scmp.ne.s32.totalorder %s75, %s76
      %p85 = scmp.eq.s32.totalorder %s23, 0
      %p86 = por %p84, %p85
      %p87 = scmp.ne.s32.totalorder %s75, %s76
      %p88 = scmp.eq.s32.totalorder %s24, 1
      %p89 = por %p87, %p88
      %p91 = scmp.ne.s32.totalorder %s76, %s90
      %p92 = scmp.eq.s32.totalorder %s24, 0
      %p93 = por %p91, %p92
      %s95 = sadd.s32 %s94, 1
      %p98 = scmp.eq.s32.totalorder %s18, 1
      %p99 = scmp.ne.s32.totalorder %s94, %s96
      %p100 = scmp.eq.s32.totalorder %s18, 0
      %p101 = por %p99, %p100
      %p102 = scmp.ne.s32.totalorder %s94, %s96
      %p103 = scmp.eq.s32.totalorder %s23, 1
      %p104 = por %p102, %p103
      %p105 = scmp.ne.s32.totalorder %s96, %s97
      %p106 = scmp.eq.s32.totalorder %s23, 0
      %p107 = por %p105, %p106
      %p108 = scmp.ne.s32.totalorder %s96, %s97
      %p109 = scmp.eq.s32.totalorder %s24, 1
      %p110 = por %p108, %p109
      %p112 = scmp.ne.s32.totalorder %s97, %s111
      %p113 = scmp.eq.s32.totalorder %s24, 0
      %p114 = por %p112, %p113
      %s116 = sadd.s32 %s115, 1
      %p119 = scmp.eq.s32.totalorder %s18, 1
      %p120 = scmp.ne.s32.totalorder %s115, %s117
      %p121 = scmp.eq.s32.totalorder %s18, 0
      %p122 = por %p120, %p121
      %p123 = scmp.ne.s32.totalorder %s115, %s117
      %p124 = scmp.eq.s32.totalorder %s23, 1
      %p125 = por %p123, %p124
      %p126 = scmp.ne.s32.totalorder %s117, %s118
      %p127 = scmp.eq.s32.totalorder %s23, 0
      %p128 = por %p126, %p127
      %p129 = scmp.ne.s32.totalorder %s117, %s118
      %p130 = scmp.eq.s32.totalorder %s24, 1
      %p131 = por %p129, %p130
      %p133 = scmp.ne.s32.totalorder %s118, %s132
      %p134 = scmp.eq.s32.totalorder %s24, 0
      %p135 = por %p133, %p134
      %s137 = sadd.s32 %s136, 1
      %p140 = scmp.eq.s32.totalorder %s18, 1
      %p141 = scmp.ne.s32.totalorder %s136, %s138
      %p142 = scmp.eq.s32.totalorder %s18, 0
      %p143 = por %p141, %p142
      %p144 = scmp.ne.s32.totalorder %s136, %s138
      %p145 = scmp.eq.s32.totalorder %s23, 1
      %p146 = por %p144, %p145
      %p147 = scmp.ne.s32.totalorder %s138, %s139
      %p148 = scmp.eq.s32.totalorder %s23, 0
      %p149 = por %p147, %p148
      %p150 = scmp.ne.s32.totalorder %s138, %s139
      %p151 = scmp.eq.s32.totalorder %s24, 1
      %p152 = por %p150, %p151
      %p154 = scmp.ne.s32.totalorder %s139, %s153
      %p155 = scmp.eq.s32.totalorder %s24, 0
      %p156 = por %p154, %p155
      %s158 = sadd.s32 %s157, 1
      %p161 = scmp.eq.s32.totalorder %s18, 1
      %p162 = scmp.ne.s32.totalorder %s157, %s159
      %p163 = scmp.eq.s32.totalorder %s18, 0
      %p164 = por %p162, %p163
      %p165 = scmp.ne.s32.totalorder %s157, %s159
      %p166 = scmp.eq.s32.totalorder %s23, 1
      %p167 = por %p165, %p166
      %p168 = scmp.ne.s32.totalorder %s159, %s160
      %p169 = scmp.eq.s32.totalorder %s23, 0
      %p170 = por %p168, %p169
      %p171 = scmp.ne.s32.totalorder %s159, %s160
      %p172 = scmp.eq.s32.totalorder %s24, 1
      %p173 = por %p171, %p172
      %p175 = scmp.ne.s32.totalorder %s160, %s174
      %p176 = scmp.eq.s32.totalorder %s24, 0
      %p177 = por %p175, %p176
      %s178 = ssub.s32 %s18, %s25
      %p179 = scmp.eq.s32.totalorder %s178, 0
      %s181 = sadd.s32 %s180, 1
      %s182 = scalar_select %p179, %s180, %s181
      %p185 = pneg %p179
      %p186 = scmp.eq.s32.totalorder %s18, 1
      %p187 = por %p185, %p186
      %p188 = scmp.ne.s32.totalorder %s180, %s183
      %p189 = scmp.eq.s32.totalorder %s18, 0
      %p190 = por %p188, %p189
      %p191 = scmp.ne.s32.totalorder %s180, %s183
      %p192 = scmp.eq.s32.totalorder %s23, 1
      %p193 = por %p191, %p192
      %p194 = scmp.ne.s32.totalorder %s183, %s184
      %p195 = scmp.eq.s32.totalorder %s23, 0
      %p196 = por %p194, %p195
      %p197 = scmp.ne.s32.totalorder %s183, %s184
      %p198 = scmp.eq.s32.totalorder %s24, 1
      %p199 = por %p197, %p198
      %p201 = scmp.ne.s32.totalorder %s184, %s200
      %p202 = scmp.eq.s32.totalorder %s24, 0
      %p203 = por %p201, %p202
      %p204 = scmp.le.s32.totalorder 1, %s18
      %p205 = scmp.lt.s32.totalorder %s18, 3
      %p206 = pnand %p204, %p205
      %p207 = pneg %p206
      // Predicated region
      $region9: #{tpu_custom_call.1} parent=5 // pred_check
        _
      $region10: #{tpu_custom_call.1} parent=5 // pred_check_branch
        %209 = sbr.rel (%p206) target = $region12
      $region11: #{tpu_custom_call.1} parent=5 // pred_region
        %s210 = ssub.s32 %s18, 1
        // Predicated region
        $region13: #{tpu_custom_call.1} parent=11 // pred_check
          %p211 = pneg %p65
        $region14: #{tpu_custom_call.1} parent=11 // pred_check_branch
          %213 = sbr.rel (%p211) target = $region16
        $region15: #{tpu_custom_call.1} parent=11 // pred_region
          _
        $region16: #{tpu_custom_call.1} parent=11 // pred_fallthru
          _
        // Predicated region
        $region17: #{tpu_custom_call.1} parent=11 // pred_check
          %p214 = pneg %p86
        $region18: #{tpu_custom_call.1} parent=11 // pred_check_branch
          %216 = sbr.rel (%p214) target = $region20
        $region19: #{tpu_custom_call.1} parent=11 // pred_region
          _
        $region20: #{tpu_custom_call.1} parent=11 // pred_fallthru
          _
        // Predicated region
        $region21: #{tpu_custom_call.1} parent=11 // pred_check
          %p217 = pneg %p107
        $region22: #{tpu_custom_call.1} parent=11 // pred_check_branch
          %219 = sbr.rel (%p217) target = $region24
        $region23: #{tpu_custom_call.1} parent=11 // pred_region
          _
        $region24: #{tpu_custom_call.1} parent=11 // pred_fallthru
          _
        // Predicated region
        $region25: #{tpu_custom_call.1} parent=11 // pred_check
          %p220 = pneg %p128
        $region26: #{tpu_custom_call.1} parent=11 // pred_check_branch
          %222 = sbr.rel (%p220) target = $region28
        $region27: #{tpu_custom_call.1} parent=11 // pred_region
          %s224 = ssub.s32 2048, 2048
          %225 = vsyncadd [#allocation3], %s224
          %s226 = sshll.u32 [#allocation2], 4
          %s227 = int_to_ptr.vmem [resolvable:$true] %s226
          %232 = dma.hbm_to_vmem [thread:$0]  %s4, 2048, %s227, [#allocation3], 256, 256, 16
        $region28: #{tpu_custom_call.1} parent=11 // pred_fallthru
          _
        // Predicated region
        $region29: #{tpu_custom_call.1} parent=11 // pred_check
          %p233 = pneg %p149
        $region30: #{tpu_custom_call.1} parent=11 // pred_check_branch
          %235 = sbr.rel (%p233) target = $region32
        $region31: #{tpu_custom_call.1} parent=11 // pred_region
          %s237 = ssub.s32 16384, 16384
          %238 = vsyncadd [#allocation6], %s237
          %s239 = sshll.u32 [#allocation5], 4
          %s240 = int_to_ptr.vmem [resolvable:$true] %s239
          %245 = dma.hbm_to_vmem [thread:$0]  %s5, 16384, %s240, [#allocation6], 256, 256, 16
        $region32: #{tpu_custom_call.1} parent=11 // pred_fallthru
          _
        // Predicated region
        $region33: #{tpu_custom_call.1} parent=11 // pred_check
          %p246 = pneg %p170
        $region34: #{tpu_custom_call.1} parent=11 // pred_check_branch
          %248 = sbr.rel (%p246) target = $region36
        $region35: #{tpu_custom_call.1} parent=11 // pred_region
          %s250 = ssub.s32 4096, 4096
          %251 = vsyncadd [#allocation6], %s250
          %s252 = sshll.u32 [#allocation7], 4
          %s253 = int_to_ptr.vmem [resolvable:$true] %s252
          %258 = dma.hbm_to_vmem [thread:$0]  %s6, 4096, %s253, [#allocation6], 64, 64, 4
        $region36: #{tpu_custom_call.1} parent=11 // pred_fallthru
          _
      $region12: #{tpu_custom_call.1} parent=5 // pred_fallthru
        _
      %p259 = scmp.lt.s32.totalorder %s18, 2
      // Predicated region
      $region37: #{tpu_custom_call.1} parent=5 // pred_check
        %p260 = pneg %p259
      $region38: #{tpu_custom_call.1} parent=5 // pred_check_branch
        %262 = sbr.rel (%p260) target = $region40
      $region39: #{tpu_custom_call.1} parent=5 // pred_region
        // Predicated region
        $region41: #{tpu_custom_call.1} parent=39 // pred_check
          %p263 = pneg %p38
        $region42: #{tpu_custom_call.1} parent=39 // pred_check_branch
          %265 = sbr.rel (%p263) target = $region44
        $region43: #{tpu_custom_call.1} parent=39 // pred_region
          %p266 = scmp.lt.s32.totalorder %s18, 1
          %s267 = scalar_select %p266, %s18, 1
          %s268 = smul.addr %s267, 8
          %s269 = scalar_lea.vmem %s0, %s268
        $region44: #{tpu_custom_call.1} parent=39 // pred_fallthru
          _
      $region40: #{tpu_custom_call.1} parent=5 // pred_fallthru
        _
      %p270 = scmp.le.s32.totalorder 1, %s18
      %p271 = scmp.lt.s32.totalorder %s18, 3
      %p272 = pnand %p270, %p271
      %p273 = pneg %p272
      // Predicated region
      $region45: #{tpu_custom_call.1} parent=5 // pred_check
        _
      $region46: #{tpu_custom_call.1} parent=5 // pred_check_branch
        %275 = sbr.rel (%p272) target = $region48
      $region47: #{tpu_custom_call.1} parent=5 // pred_region
        %s276 = ssub.s32 %s18, 1
        // Predicated region
        $region49: #{tpu_custom_call.1} parent=47 // pred_check
          %p277 = pneg %p128
        $region50: #{tpu_custom_call.1} parent=47 // pred_check_branch
          %279 = sbr.rel (%p277) target = $region52
        $region51: #{tpu_custom_call.1} parent=47 // pred_region
          %280 = dma.done [#allocation3], 2048
        $region52: #{tpu_custom_call.1} parent=47 // pred_fallthru
          _
        // Predicated region
        $region53: #{tpu_custom_call.1} parent=47 // pred_check
          %p281 = pneg %p149
        $region54: #{tpu_custom_call.1} parent=47 // pred_check_branch
          %283 = sbr.rel (%p281) target = $region56
        $region55: #{tpu_custom_call.1} parent=47 // pred_region
          %284 = dma.done [#allocation6], 16384
        $region56: #{tpu_custom_call.1} parent=47 // pred_fallthru
          _
        // Predicated region
        $region57: #{tpu_custom_call.1} parent=47 // pred_check
          %p285 = pneg %p170
        $region58: #{tpu_custom_call.1} parent=47 // pred_check_branch
          %287 = sbr.rel (%p285) target = $region60
        $region59: #{tpu_custom_call.1} parent=47 // pred_region
          %288 = dma.done [#allocation6], 4096
        $region60: #{tpu_custom_call.1} parent=47 // pred_fallthru
          _
        %p289 = scmp.lt.s32.totalorder %s23, 1
        %s290 = scalar_select %p289, %s23, 1
        %s291 = smul.addr %s290, 8
        %s292 = scalar_lea.vmem %s0, %s291
        %p293 = pneg %p44
        %p294 = pneg %p41
        %p295 = pneg %p65
        %p296 = pneg %p62
        %p297 = pneg %p86
        %p298 = pneg %p83
        %p299 = pneg %p107
        %p300 = pneg %p104
        %p301 = pneg %p128
        %p302 = pneg %p125
        %p303 = pneg %p149
        %p304 = pneg %p146
        %p305 = pneg %p170
        %p306 = pneg %p167
        %p307 = pneg %p196
        %p308 = pneg %p193
        %s309 = sand.u32 %s183, 1
        %s310 = scalar_lea.sflag [#allocation4], %s309
        %s311 = sand.u32 %s183, 1
        %s312 = smul.addr %s311, 8
        %s313 = scalar_lea.vmem [#allocation8], %s312
        %p314 = scmp.lt.s32.totalorder %s23, 1
        %s315 = scalar_select %p314, %s23, 1
        %s316 = smul.addr %s315, 8
        %s317 = scalar_lea.vmem %s0, %s316
        %v319 = vld [vmem:[%s317] sm:$0xff]
        %vm320 = vcmask 523264
        %v321 = vsel %vm320, %v319, 0.0
        %322 = vadd.xlane.f32.xlu0 %v321
        %v323 = vpop.xlane.xlu0 %322
        %v324 = vmul.f32 %v319, %v319
        %v325 = vsel %vm320, %v324, 0.0
        %326 = vadd.xlane.f32.xlu0 %v325
        %v327 = vpop.xlane.xlu0 %326
        %v328 = vmul.f32 %v323, 0.015625
        %v329 = vmul.f32 %v327, 0.015625
        %v330 = vmul.f32 %v328, %v328
        %v331 = vsub.f32 %v329, %v330
        %v332 = vsub.f32 %v319, %v328
        %v333 = vadd.f32 %v331, 1e-05
        %v334 = vrsqrt.pop %v333
        %v335 = vmul.f32 %v332, %v334
        %v336 = vld [vmem:[%s1] sm:$0x1]
        %v338 = vlaneseq
        %v339 = vshrl.u32 %v338, 7
        %v340 = vsub.s32 0, %v339
        %v341 = vrot.slane %v336, %v340
        %v343 = vmul.f32 %v335, %v341
        %v344 = vld [vmem:[%s2] sm:$0x1]
        %v346 = vlaneseq
        %v347 = vshrl.u32 %v346, 7
        %v348 = vsub.s32 0, %v347
        %v349 = vrot.slane %v344, %v348
        %v351 = vadd.f32 %v343, %v349
        %v352 = vld [vmem:[%s3] sm:$0xff]
        %v353 = vld [vmem:[%s3 + $0x8] sm:$0xff]
        %v354 = vld [vmem:[%s3 + $0x10] sm:$0xff]
        %v355 = vld [vmem:[%s3 + $0x18] sm:$0xff]
        %v356 = vld [vmem:[%s3 + $0x20] sm:$0xff]
        %v357 = vld [vmem:[%s3 + $0x28] sm:$0xff]
        %v358 = vld [vmem:[%s3 + $0x30] sm:$0xff]
        %v359 = vld [vmem:[%s3 + $0x38] sm:$0xff]
        %v361 = vsel %vm320, %v351, 0
        %363 = vmatprep.subr.mxu0 0.0
        %364 = vmatpush1.msra.mxu0 %v352
        %365 = vmatprep.subr.mxu0 0.0
        %366 = vmatpush1.msra.mxu0 %v353
        %367 = vmatprep.subr.mxu0 0.0
        %368 = vmatpush1.msra.mxu0 %v354
        %369 = vmatprep.subr.mxu0 0.0
        %370 = vmatpush1.msra.mxu0 %v355
        %371 = vmatprep.subr.mxu0 0.0
        %372 = vmatpush1.msra.mxu0 %v356
        %373 = vmatprep.subr.mxu0 0.0
        %374 = vmatpush1.msra.mxu0 %v357
        %375 = vmatprep.subr.mxu0 0.0
        %376 = vmatpush1.msra.mxu0 %v358
        %377 = vmatprep.subr.mxu0 0.0
        %378 = vmatpush1.msra.mxu0 %v359
        %379 = vmatprep.subr.mxu0 0.0
        %380 = vmatpush1.msra.mxu0 0.0
        %381 = vmatprep.subr.mxu0 0.0
        %382 = vmatpush1.msra.mxu0 0.0
        %383 = vmatprep.subr.mxu0 0.0
        %384 = vmatpush1.msra.mxu0 0.0
        %385 = vmatprep.subr.mxu0 0.0
        %386 = vmatpush1.msra.mxu0 0.0
        %387 = vmatprep.subr.mxu0 0.0
        %388 = vmatpush1.msra.mxu0 0.0
        %389 = vmatprep.subr.mxu0 0.0
        %390 = vmatpush1.msra.mxu0 0.0
        %391 = vmatprep.subr.mxu0 0.0
        %392 = vmatpush1.msra.mxu0 0.0
        %393 = vmatprep.subr.mxu0 0.0
        %394 = vmatpush1.msra.mxu0 0.0
        %395 = vmatprep.subr.mxu0 0.0
        %396 = vmatpush1.msra.mxu0 0.0
        %397 = vmatprep.subr.mxu0 0.0
        %398 = vmatpush1.msra.mxu0 0.0
        %399 = vmatprep.subr.mxu0 0.0
        %400 = vmatpush1.msra.mxu0 0.0
        %401 = vmatprep.subr.mxu0 0.0
        %402 = vmatpush1.msra.mxu0 0.0
        %403 = vmatprep.subr.mxu0 0.0
        %404 = vmatpush1.msra.mxu0 0.0
        %405 = vmatprep.subr.mxu0 0.0
        %406 = vmatpush1.msra.mxu0 0.0
        %407 = vmatprep.subr.mxu0 0.0
        %408 = vmatpush1.msra.mxu0 0.0
        %409 = vmatprep.subr.mxu0 0.0
        %410 = vmatpush1.msra.mxu0 0.0
        %411 = vmatprep.subr.mxu0 0.0
        %412 = vmatpush1.msra.mxu0 0.0
        %413 = vmatprep.subr.mxu0 0.0
        %414 = vmatpush1.msra.mxu0 0.0
        %415 = vmatprep.subr.mxu0 0.0
        %416 = vmatpush1.msra.mxu0 0.0
        %417 = vmatprep.subr.mxu0 0.0
        %418 = vmatpush1.msra.mxu0 0.0
        %419 = vmatprep.subr.mxu0 0.0
        %420 = vmatpush1.msra.mxu0 0.0
        %421 = vmatprep.subr.mxu0 0.0
        %422 = vmatpush1.msra.mxu0 0.0
        %423 = vmatprep.subr.mxu0 0.0
        %424 = vmatpush1.msra.mxu0 0.0
        %425 = vmatprep.subr.mxu0 0.0
        %426 = vmatpush1.msra.mxu0 0.0
        %427 = vmatprep.mubr.f32.mxu0 0.0
        %428 = vmatmul.mubr.f32.gmra.mrb[0].mxu0 %v361
        %v429 = vpop.f32.mrb[0].mxu0
        %v430 = vadd.f32 0.0, %v429
        %v431 = vpop.f32.mrb[0].mxu0
        %432 = vdwg.mxu0
        %vm433 = vcmask 64512
        %v434 = vsel %vm433, %v430, -inf
        %435 = vmax.xlane.f32.xlu0 %v434
        %v436 = vpop.xlane.xlu0 %435
        %vm437 = vcmp.ge.f32.partialorder %v430, %v436
        %v438 = vsel %vm437, -inf, %v430
        %v439 = vsel %vm433, %v438, -inf
        %440 = vmax.xlane.f32.xlu0 %v439
        %v441 = vpop.xlane.xlu0 %440
        %vm442 = vcmp.ge.f32.partialorder %v430, %v441
        %v443 = vsel %vm442, %v430, -inf
        %v444 = vsel %vm433, %v443, -inf
        %445 = vmax.xlane.f32.xlu0 %v444
        %v446 = vpop.xlane.xlu0 %445
        %v447 = vsub.f32 %v443, %v446
        %v448 = vmul.f32 %v447, 1.442695
        %v449 = vpow.pop %v448
        %v450 = vsel %vm442, %v449, 0.0
        %v451 = vsel %vm433, %v450, 0.0
        %452 = vadd.xlane.f32.xlu0 %v451
        %v453 = vpop.xlane.xlu0 %452
        %v454 = vrcp.pop %v453
        %v455 = vmul.f32 %v450, %v454
        %v456 = vlaneseq
        %v457 = vshrl.u32 %v456, 7
        %v458 = vlaneseq
        %v459 = vand.u32 %v458, 127
        %v460 = vadd.s32 %v459, 128
        %v461 = vadd.s32 %v459, 256
        %v462 = vadd.s32 %v459, 384
        %v463 = vmul.u32 %v457, 64
        %vm464 = vcmp.ge.s32.totalorder %v459, %v463
        %vm465 = vcmp.ge.s32.totalorder %v460, %v463
        %vm466 = vcmp.ge.s32.totalorder %v461, %v463
        %vm467 = vcmp.ge.s32.totalorder %v462, %v463
        %v468 = vadd.s32 %v463, 64
        %vm469 = vcmp.lt.s32.totalorder %v459, %v468
        %vm470 = vcmp.lt.s32.totalorder %v460, %v468
        %vm471 = vcmp.lt.s32.totalorder %v461, %v468
        %vm472 = vcmp.lt.s32.totalorder %v462, %v468
        %vm473 = vmand %vm464, %vm469
        %vm474 = vmand %vm465, %vm470
        %vm475 = vmand %vm466, %vm471
        %vm476 = vmand %vm467, %vm472
        %v477 = vsel %vm473, 1, 0
        %v478 = vsel %vm474, 1, 0
        %v479 = vsel %vm475, 1, 0
        %v480 = vsel %vm476, 1, 0
        %v481 = vcvt.s32.f32 %v477
        %v482 = vcvt.s32.f32 %v478
        %v483 = vcvt.s32.f32 %v479
        %v484 = vcvt.s32.f32 %v480
        %v485 = vpack.c.bf16 %v481, %v481
        %v486 = vpack.c.bf16 %v482, %v482
        %v487 = vpack.c.bf16 %v483, %v483
        %v488 = vpack.c.bf16 %v484, %v484
        %v489 = vpack.c.bf16 %v455, %v455
        %v491 = vsel %vm433, %v489, 0
        %vm493 = vcmask 1043456
        %v495 = vsel %vm493, %v485, 0
        %v498 = vsel %vm493, %v486, 0
        %v501 = vsel %vm493, %v487, 0
        %v504 = vsel %vm493, %v488, 0
        %506 = vmatprep.subr.bf16.mxu0 %v498
        %507 = vmatpush1.bf16.msra.mxu0 %v495
        %508 = vmatprep.subr.bf16.mxu0 0
        %509 = vmatpush1.bf16.msra.mxu0 0
        %510 = vmatprep.subr.bf16.mxu0 0
        %511 = vmatpush1.bf16.msra.mxu0 0
        %512 = vmatprep.subr.bf16.mxu0 0
        %513 = vmatpush1.bf16.msra.mxu0 0
        %514 = vmatprep.subr.bf16.mxu0 0
        %515 = vmatpush1.bf16.msra.mxu0 0
        %516 = vmatprep.subr.bf16.mxu0 0
        %517 = vmatpush1.bf16.msra.mxu0 0
        %518 = vmatprep.subr.bf16.mxu0 0
        %519 = vmatpush1.bf16.msra.mxu0 0
        %520 = vmatprep.subr.bf16.mxu0 0
        %521 = vmatpush1.bf16.msra.mxu0 0
        %522 = vmatprep.subr.bf16.mxu0 0
        %523 = vmatpush1.bf16.msra.mxu0 0
        %524 = vmatprep.subr.bf16.mxu0 0
        %525 = vmatpush1.bf16.msra.mxu0 0
        %526 = vmatprep.subr.bf16.mxu0 0
        %527 = vmatpush1.bf16.msra.mxu0 0
        %528 = vmatprep.subr.bf16.mxu0 0
        %529 = vmatpush1.bf16.msra.mxu0 0
        %530 = vmatprep.subr.bf16.mxu0 0
        %531 = vmatpush1.bf16.msra.mxu0 0
        %532 = vmatprep.subr.bf16.mxu0 0
        %533 = vmatpush1.bf16.msra.mxu0 0
        %534 = vmatprep.subr.bf16.mxu0 0
        %535 = vmatpush1.bf16.msra.mxu0 0
        %536 = vmatprep.subr.bf16.mxu0 0
        %537 = vmatpush1.bf16.msra.mxu0 0
        %538 = vmatprep.mubr.bf16.mxu0 0
        %539 = vmatmul.mubr.bf16.gmra.mrb[0].mxu0 %v491
        %v540 = vpop.f32.mrb[0].mxu0
        %v541 = vadd.f32 0.0, %v540
        %v542 = vpop.f32.mrb[0].mxu0
        %v543 = vadd.f32 0.0, %v542
        %v544 = vpop.f32.mrb[0].mxu0
        %v545 = vpop.f32.mrb[0].mxu0
        %546 = vdwg.mxu0
        %547 = vmatprep.subr.bf16.mxu0 %v504
        %548 = vmatpush1.bf16.msra.mxu0 %v501
        %549 = vmatprep.subr.bf16.mxu0 0
        %550 = vmatpush1.bf16.msra.mxu0 0
        %551 = vmatprep.subr.bf16.mxu0 0
        %552 = vmatpush1.bf16.msra.mxu0 0
        %553 = vmatprep.subr.bf16.mxu0 0
        %554 = vmatpush1.bf16.msra.mxu0 0
        %555 = vmatprep.subr.bf16.mxu0 0
        %556 = vmatpush1.bf16.msra.mxu0 0
        %557 = vmatprep.subr.bf16.mxu0 0
        %558 = vmatpush1.bf16.msra.mxu0 0
        %559 = vmatprep.subr.bf16.mxu0 0
        %560 = vmatpush1.bf16.msra.mxu0 0
        %561 = vmatprep.subr.bf16.mxu0 0
        %562 = vmatpush1.bf16.msra.mxu0 0
        %563 = vmatprep.subr.bf16.mxu0 0
        %564 = vmatpush1.bf16.msra.mxu0 0
        %565 = vmatprep.subr.bf16.mxu0 0
        %566 = vmatpush1.bf16.msra.mxu0 0
        %567 = vmatprep.subr.bf16.mxu0 0
        %568 = vmatpush1.bf16.msra.mxu0 0
        %569 = vmatprep.subr.bf16.mxu0 0
        %570 = vmatpush1.bf16.msra.mxu0 0
        %571 = vmatprep.subr.bf16.mxu0 0
        %572 = vmatpush1.bf16.msra.mxu0 0
        %573 = vmatprep.subr.bf16.mxu0 0
        %574 = vmatpush1.bf16.msra.mxu0 0
        %575 = vmatprep.subr.bf16.mxu0 0
        %576 = vmatpush1.bf16.msra.mxu0 0
        %577 = vmatprep.subr.bf16.mxu0 0
        %578 = vmatpush1.bf16.msra.mxu0 0
        %579 = vmatprep.mubr.bf16.mxu0 0
        %580 = vmatmul.mubr.bf16.gmra.mrb[0].mxu0 %v491
        %v581 = vpop.f32.mrb[0].mxu0
        %v582 = vadd.f32 0.0, %v581
        %v583 = vpop.f32.mrb[0].mxu0
        %v584 = vadd.f32 0.0, %v583
        %v585 = vpop.f32.mrb[0].mxu0
        %v586 = vpop.f32.mrb[0].mxu0
        %587 = vdwg.mxu0
        %v588 = vpack.c.bf16 %v319, %v319
        %v589 = vld [vmem:[#allocation2] sm:$0xff]
        %v590 = vld [vmem:[#allocation2 + $0x8] sm:$0xff]
        %v591 = vld [vmem:[#allocation2 + $0x10] sm:$0xff]
        %v592 = vld [vmem:[#allocation2 + $0x18] sm:$0xff]
        %v593 = vld [vmem:[#allocation2 + $0x20] sm:$0xff]
        %v594 = vld [vmem:[#allocation2 + $0x28] sm:$0xff]
        %v595 = vld [vmem:[#allocation2 + $0x30] sm:$0xff]
        %v596 = vld [vmem:[#allocation2 + $0x38] sm:$0xff]
        %v597 = vld [vmem:[#allocation2 + $0x40] sm:$0xff]
        %v598 = vld [vmem:[#allocation2 + $0x48] sm:$0xff]
        %v599 = vld [vmem:[#allocation2 + $0x50] sm:$0xff]
        %v600 = vld [vmem:[#allocation2 + $0x58] sm:$0xff]
        %v601 = vld [vmem:[#allocation2 + $0x60] sm:$0xff]
        %v602 = vld [vmem:[#allocation2 + $0x68] sm:$0xff]
        %v603 = vld [vmem:[#allocation2 + $0x70] sm:$0xff]
        %v604 = vld [vmem:[#allocation2 + $0x78] sm:$0xff]
        %v621 = vunpack.c.l.b16 %v589
        %v622 = vunpack.c.h.b16 %v589
        %v623 = vunpack.c.l.b16 %v590
        %v624 = vunpack.c.h.b16 %v590
        %v625 = vunpack.c.l.b16 %v591
        %v626 = vunpack.c.h.b16 %v591
        %v627 = vunpack.c.l.b16 %v592
        %v628 = vunpack.c.h.b16 %v592
        %v629 = vunpack.c.l.b16 %v593
        %v630 = vunpack.c.h.b16 %v593
        %v631 = vunpack.c.l.b16 %v594
        %v632 = vunpack.c.h.b16 %v594
        %v633 = vunpack.c.l.b16 %v595
        %v634 = vunpack.c.h.b16 %v595
        %v635 = vunpack.c.l.b16 %v596
        %v636 = vunpack.c.h.b16 %v596
        %v637 = vunpack.c.l.b16 %v597
        %v638 = vunpack.c.h.b16 %v597
        %v639 = vunpack.c.l.b16 %v598
        %v640 = vunpack.c.h.b16 %v598
        %v641 = vunpack.c.l.b16 %v599
        %v642 = vunpack.c.h.b16 %v599
        %v643 = vunpack.c.l.b16 %v600
        %v644 = vunpack.c.h.b16 %v600
        %v645 = vunpack.c.l.b16 %v601
        %v646 = vunpack.c.h.b16 %v601
        %v647 = vunpack.c.l.b16 %v602
        %v648 = vunpack.c.h.b16 %v602
        %v649 = vunpack.c.l.b16 %v603
        %v650 = vunpack.c.h.b16 %v603
        %v651 = vunpack.c.l.b16 %v604
        %v652 = vunpack.c.h.b16 %v604
        %v653 = vpack.c.b16 %v625, %v621
        %v654 = vpack.c.b16 %v626, %v622
        %v655 = vpack.c.b16 %v627, %v623
        %v656 = vpack.c.b16 %v628, %v624
        %v657 = vpack.c.b16 %v633, %v629
        %v658 = vpack.c.b16 %v634, %v630
        %v659 = vpack.c.b16 %v635, %v631
        %v660 = vpack.c.b16 %v636, %v632
        %v661 = vpack.c.b16 %v641, %v637
        %v662 = vpack.c.b16 %v642, %v638
        %v663 = vpack.c.b16 %v643, %v639
        %v664 = vpack.c.b16 %v644, %v640
        %v665 = vpack.c.b16 %v649, %v645
        %v666 = vpack.c.b16 %v650, %v646
        %v667 = vpack.c.b16 %v651, %v647
        %v668 = vpack.c.b16 %v652, %v648
        %v686 = vsel %vm320, %v588, 0
        %688 = vmatprep.subr.bf16.mxu0 %v654
        %689 = vmatpush1.bf16.msra.mxu0 %v653
        %690 = vmatprep.subr.bf16.mxu0 %v658
        %691 = vmatpush1.bf16.msra.mxu0 %v657
        %692 = vmatprep.subr.bf16.mxu0 %v662
        %693 = vmatpush1.bf16.msra.mxu0 %v661
        %694 = vmatprep.subr.bf16.mxu0 %v666
        %695 = vmatpush1.bf16.msra.mxu0 %v665
        %696 = vmatprep.subr.bf16.mxu0 0
        %697 = vmatpush1.bf16.msra.mxu0 0
        %698 = vmatprep.subr.bf16.mxu0 0
        %699 = vmatpush1.bf16.msra.mxu0 0
        %700 = vmatprep.subr.bf16.mxu0 0
        %701 = vmatpush1.bf16.msra.mxu0 0
        %702 = vmatprep.subr.bf16.mxu0 0
        %703 = vmatpush1.bf16.msra.mxu0 0
        %704 = vmatprep.subr.bf16.mxu0 0
        %705 = vmatpush1.bf16.msra.mxu0 0
        %706 = vmatprep.subr.bf16.mxu0 0
        %707 = vmatpush1.bf16.msra.mxu0 0
        %708 = vmatprep.subr.bf16.mxu0 0
        %709 = vmatpush1.bf16.msra.mxu0 0
        %710 = vmatprep.subr.bf16.mxu0 0
        %711 = vmatpush1.bf16.msra.mxu0 0
        %712 = vmatprep.subr.bf16.mxu0 0
        %713 = vmatpush1.bf16.msra.mxu0 0
        %714 = vmatprep.subr.bf16.mxu0 0
        %715 = vmatpush1.bf16.msra.mxu0 0
        %716 = vmatprep.subr.bf16.mxu0 0
        %717 = vmatpush1.bf16.msra.mxu0 0
        %718 = vmatprep.subr.bf16.mxu0 0
        %719 = vmatpush1.bf16.msra.mxu0 0
        %720 = vmatprep.mubr.bf16.mxu0 0
        %721 = vmatmul.mubr.bf16.gmra.mrb[0].mxu0 %v686
        %v722 = vpop.f32.mrb[0].mxu0
        %v723 = vadd.f32 0.0, %v722
        %v724 = vpop.f32.mrb[0].mxu0
        %v725 = vadd.f32 0.0, %v724
        %v726 = vpop.f32.mrb[0].mxu0
        %v727 = vpop.f32.mrb[0].mxu0
        %728 = vdwg.mxu0
        %729 = vmatprep.subr.bf16.mxu0 %v656
        %730 = vmatpush1.bf16.msra.mxu0 %v655
        %731 = vmatprep.subr.bf16.mxu0 %v660
        %732 = vmatpush1.bf16.msra.mxu0 %v659
        %733 = vmatprep.subr.bf16.mxu0 %v664
        %734 = vmatpush1.bf16.msra.mxu0 %v663
        %735 = vmatprep.subr.bf16.mxu0 %v668
        %736 = vmatpush1.bf16.msra.mxu0 %v667
        %737 = vmatprep.subr.bf16.mxu0 0
        %738 = vmatpush1.bf16.msra.mxu0 0
        %739 = vmatprep.subr.bf16.mxu0 0
        %740 = vmatpush1.bf16.msra.mxu0 0
        %741 = vmatprep.subr.bf16.mxu0 0
        %742 = vmatpush1.bf16.msra.mxu0 0
        %743 = vmatprep.subr.bf16.mxu0 0
        %744 = vmatpush1.bf16.msra.mxu0 0
        %745 = vmatprep.subr.bf16.mxu0 0
        %746 = vmatpush1.bf16.msra.mxu0 0
        %747 = vmatprep.subr.bf16.mxu0 0
        %748 = vmatpush1.bf16.msra.mxu0 0
        %749 = vmatprep.subr.bf16.mxu0 0
        %750 = vmatpush1.bf16.msra.mxu0 0
        %751 = vmatprep.subr.bf16.mxu0 0
        %752 = vmatpush1.bf16.msra.mxu0 0
        %753 = vmatprep.subr.bf16.mxu0 0
        %754 = vmatpush1.bf16.msra.mxu0 0
        %755 = vmatprep.subr.bf16.mxu0 0
        %756 = vmatpush1.bf16.msra.mxu0 0
        %757 = vmatprep.subr.bf16.mxu0 0
        %758 = vmatpush1.bf16.msra.mxu0 0
        %759 = vmatprep.subr.bf16.mxu0 0
        %760 = vmatpush1.bf16.msra.mxu0 0
        %761 = vmatprep.mubr.bf16.mxu0 0
        %762 = vmatmul.mubr.bf16.gmra.mrb[0].mxu0 %v686
        %v763 = vpop.f32.mrb[0].mxu0
        %v764 = vadd.f32 0.0, %v763
        %v765 = vpop.f32.mrb[0].mxu0
        %v766 = vadd.f32 0.0, %v765
        %v767 = vpop.f32.mrb[0].mxu0
        %v768 = vpop.f32.mrb[0].mxu0
        %769 = vdwg.mxu0
        %v770 = vpack.c.bf16 %v723, %v723
        %v771 = vpack.c.bf16 %v725, %v725
        %v772 = vpack.c.bf16 %v764, %v764
        %v773 = vpack.c.bf16 %v766, %v766
        %v774 = vld [vmem:[#allocation5] sm:$0xff]
        %v775 = vld [vmem:[#allocation5 + $0x8] sm:$0xff]
        %v776 = vld [vmem:[#allocation5 + $0x10] sm:$0xff]
        %v777 = vld [vmem:[#allocation5 + $0x18] sm:$0xff]
        %v778 = vld [vmem:[#allocation5 + $0x20] sm:$0xff]
        %v779 = vld [vmem:[#allocation5 + $0x28] sm:$0xff]
        %v780 = vld [vmem:[#allocation5 + $0x30] sm:$0xff]
        %v781 = vld [vmem:[#allocation5 + $0x38] sm:$0xff]
        %v782 = vld [vmem:[#allocation5 + $0x40] sm:$0xff]
        %v783 = vld [vmem:[#allocation5 + $0x48] sm:$0xff]
        %v784 = vld [vmem:[#allocation5 + $0x50] sm:$0xff]
        %v785 = vld [vmem:[#allocation5 + $0x58] sm:$0xff]
        %v786 = vld [vmem:[#allocation5 + $0x60] sm:$0xff]
        %v787 = vld [vmem:[#allocation5 + $0x68] sm:$0xff]
        %v788 = vld [vmem:[#allocation5 + $0x70] sm:$0xff]
        %v789 = vld [vmem:[#allocation5 + $0x78] sm:$0xff]
        %v790 = vld [vmem:[#allocation5 + $0x80] sm:$0xff]
        %v791 = vld [vmem:[#allocation5 + $0x88] sm:$0xff]
        %v792 = vld [vmem:[#allocation5 + $0x90] sm:$0xff]
        %v793 = vld [vmem:[#allocation5 + $0x98] sm:$0xff]
        %v794 = vld [vmem:[#allocation5 + $0xa0] sm:$0xff]
        %v795 = vld [vmem:[#allocation5 + $0xa8] sm:$0xff]
        %v796 = vld [vmem:[#allocation5 + $0xb0] sm:$0xff]
        %v797 = vld [vmem:[#allocation5 + $0xb8] sm:$0xff]
        %v798 = vld [vmem:[#allocation5 + $0xc0] sm:$0xff]
        %v799 = vld [vmem:[#allocation5 + $0xc8] sm:$0xff]
        %v800 = vld [vmem:[#allocation5 + $0xd0] sm:$0xff]
        %v801 = vld [vmem:[#allocation5 + $0xd8] sm:$0xff]
        %v802 = vld [vmem:[#allocation5 + $0xe0] sm:$0xff]
        %v803 = vld [vmem:[#allocation5 + $0xe8] sm:$0xff]
        %v804 = vld [vmem:[#allocation5 + $0xf0] sm:$0xff]
        %v805 = vld [vmem:[#allocation5 + $0xf8] sm:$0xff]
        %v806 = vld [vmem:[#allocation5 + $0x100] sm:$0xff]
        %v807 = vld [vmem:[#allocation5 + $0x108] sm:$0xff]
        %v808 = vld [vmem:[#allocation5 + $0x110] sm:$0xff]
        %v809 = vld [vmem:[#allocation5 + $0x118] sm:$0xff]
        %v810 = vld [vmem:[#allocation5 + $0x120] sm:$0xff]
        %v811 = vld [vmem:[#allocation5 + $0x128] sm:$0xff]
        %v812 = vld [vmem:[#allocation5 + $0x130] sm:$0xff]
        %v813 = vld [vmem:[#allocation5 + $0x138] sm:$0xff]
        %v814 = vld [vmem:[#allocation5 + $0x140] sm:$0xff]
        %v815 = vld [vmem:[#allocation5 + $0x148] sm:$0xff]
        %v816 = vld [vmem:[#allocation5 + $0x150] sm:$0xff]
        %v817 = vld [vmem:[#allocation5 + $0x158] sm:$0xff]
        %v818 = vld [vmem:[#allocation5 + $0x160] sm:$0xff]
        %v819 = vld [vmem:[#allocation5 + $0x168] sm:$0xff]
        %v820 = vld [vmem:[#allocation5 + $0x170] sm:$0xff]
        %v821 = vld [vmem:[#allocation5 + $0x178] sm:$0xff]
        %v822 = vld [vmem:[#allocation5 + $0x180] sm:$0xff]
        %v823 = vld [vmem:[#allocation5 + $0x188] sm:$0xff]
        %v824 = vld [vmem:[#allocation5 + $0x190] sm:$0xff]
        %v825 = vld [vmem:[#allocation5 + $0x198] sm:$0xff]
        %v826 = vld [vmem:[#allocation5 + $0x1a0] sm:$0xff]
        %v827 = vld [vmem:[#allocation5 + $0x1a8] sm:$0xff]
        %v828 = vld [vmem:[#allocation5 + $0x1b0] sm:$0xff]
        %v829 = vld [vmem:[#allocation5 + $0x1b8] sm:$0xff]
        %v830 = vld [vmem:[#allocation5 + $0x1c0] sm:$0xff]
        %v831 = vld [vmem:[#allocation5 + $0x1c8] sm:$0xff]
        %v832 = vld [vmem:[#allocation5 + $0x1d0] sm:$0xff]
        %v833 = vld [vmem:[#allocation5 + $0x1d8] sm:$0xff]
        %v834 = vld [vmem:[#allocation5 + $0x1e0] sm:$0xff]
        %v835 = vld [vmem:[#allocation5 + $0x1e8] sm:$0xff]
        %v836 = vld [vmem:[#allocation5 + $0x1f0] sm:$0xff]
        %v837 = vld [vmem:[#allocation5 + $0x1f8] sm:$0xff]
        %v838 = vld [vmem:[#allocation5 + $0x200] sm:$0xff]
        %v839 = vld [vmem:[#allocation5 + $0x208] sm:$0xff]
        %v840 = vld [vmem:[#allocation5 + $0x210] sm:$0xff]
        %v841 = vld [vmem:[#allocation5 + $0x218] sm:$0xff]
        %v842 = vld [vmem:[#allocation5 + $0x220] sm:$0xff]
        %v843 = vld [vmem:[#allocation5 + $0x228] sm:$0xff]
        %v844 = vld [vmem:[#allocation5 + $0x230] sm:$0xff]
        %v845 = vld [vmem:[#allocation5 + $0x238] sm:$0xff]
        %v846 = vld [vmem:[#allocation5 + $0x240] sm:$0xff]
        %v847 = vld [vmem:[#allocation5 + $0x248] sm:$0xff]
        %v848 = vld [vmem:[#allocation5 + $0x250] sm:$0xff]
        %v849 = vld [vmem:[#allocation5 + $0x258] sm:$0xff]
        %v850 = vld [vmem:[#allocation5 + $0x260] sm:$0xff]
        %v851 = vld [vmem:[#allocation5 + $0x268] sm:$0xff]
        %v852 = vld [vmem:[#allocation5 + $0x270] sm:$0xff]
        %v853 = vld [vmem:[#allocation5 + $0x278] sm:$0xff]
        %v854 = vld [vmem:[#allocation5 + $0x280] sm:$0xff]
        %v855 = vld [vmem:[#allocation5 + $0x288] sm:$0xff]
        %v856 = vld [vmem:[#allocation5 + $0x290] sm:$0xff]
        %v857 = vld [vmem:[#allocation5 + $0x298] sm:$0xff]
        %v858 = vld [vmem:[#allocation5 + $0x2a0] sm:$0xff]
        %v859 = vld [vmem:[#allocation5 + $0x2a8] sm:$0xff]
        %v860 = vld [vmem:[#allocation5 + $0x2b0] sm:$0xff]
        %v861 = vld [vmem:[#allocation5 + $0x2b8] sm:$0xff]
        %v862 = vld [vmem:[#allocation5 + $0x2c0] sm:$0xff]
        %v863 = vld [vmem:[#allocation5 + $0x2c8] sm:$0xff]
        %v864 = vld [vmem:[#allocation5 + $0x2d0] sm:$0xff]
        %v865 = vld [vmem:[#allocation5 + $0x2d8] sm:$0xff]
        %v866 = vld [vmem:[#allocation5 + $0x2e0] sm:$0xff]
        %v867 = vld [vmem:[#allocation5 + $0x2e8] sm:$0xff]
        %v868 = vld [vmem:[#allocation5 + $0x2f0] sm:$0xff]
        %v869 = vld [vmem:[#allocation5 + $0x2f8] sm:$0xff]
        %v870 = vld [vmem:[#allocation5 + $0x300] sm:$0xff]
        %v871 = vld [vmem:[#allocation5 + $0x308] sm:$0xff]
        %v872 = vld [vmem:[#allocation5 + $0x310] sm:$0xff]
        %v873 = vld [vmem:[#allocation5 + $0x318] sm:$0xff]
        %v874 = vld [vmem:[#allocation5 + $0x320] sm:$0xff]
        %v875 = vld [vmem:[#allocation5 + $0x328] sm:$0xff]
        %v876 = vld [vmem:[#allocation5 + $0x330] sm:$0xff]
        %v877 = vld [vmem:[#allocation5 + $0x338] sm:$0xff]
        %v878 = vld [vmem:[#allocation5 + $0x340] sm:$0xff]
        %v879 = vld [vmem:[#allocation5 + $0x348] sm:$0xff]
        %v880 = vld [vmem:[#allocation5 + $0x350] sm:$0xff]
        %v881 = vld [vmem:[#allocation5 + $0x358] sm:$0xff]
        %v882 = vld [vmem:[#allocation5 + $0x360] sm:$0xff]
        %v883 = vld [vmem:[#allocation5 + $0x368] sm:$0xff]
        %v884 = vld [vmem:[#allocation5 + $0x370] sm:$0xff]
        %v885 = vld [vmem:[#allocation5 + $0x378] sm:$0xff]
        %v886 = vld [vmem:[#allocation5 + $0x380] sm:$0xff]
        %v887 = vld [vmem:[#allocation5 + $0x388] sm:$0xff]
        %v888 = vld [vmem:[#allocation5 + $0x390] sm:$0xff]
        %v889 = vld [vmem:[#allocation5 + $0x398] sm:$0xff]
        %v890 = vld [vmem:[#allocation5 + $0x3a0] sm:$0xff]
        %v891 = vld [vmem:[#allocation5 + $0x3a8] sm:$0xff]
        %v892 = vld [vmem:[#allocation5 + $0x3b0] sm:$0xff]
        %v893 = vld [vmem:[#allocation5 + $0x3b8] sm:$0xff]
        %v894 = vld [vmem:[#allocation5 + $0x3c0] sm:$0xff]
        %v895 = vld [vmem:[#allocation5 + $0x3c8] sm:$0xff]
        %v896 = vld [vmem:[#allocation5 + $0x3d0] sm:$0xff]
        %v897 = vld [vmem:[#allocation5 + $0x3d8] sm:$0xff]
        %v898 = vld [vmem:[#allocation5 + $0x3e0] sm:$0xff]
        %v899 = vld [vmem:[#allocation5 + $0x3e8] sm:$0xff]
        %v900 = vld [vmem:[#allocation5 + $0x3f0] sm:$0xff]
        %v901 = vld [vmem:[#allocation5 + $0x3f8] sm:$0xff]
        %v1030 = vunpack.c.l.b16 %v774
        %v1031 = vunpack.c.h.b16 %v774
        %v1032 = vunpack.c.l.b16 %v775
        %v1033 = vunpack.c.h.b16 %v775
        %v1034 = vunpack.c.l.b16 %v776
        %v1035 = vunpack.c.h.b16 %v776
        %v1036 = vunpack.c.l.b16 %v777
        %v1037 = vunpack.c.h.b16 %v777
        %v1038 = vunpack.c.l.b16 %v778
        %v1039 = vunpack.c.h.b16 %v778
        %v1040 = vunpack.c.l.b16 %v779
        %v1041 = vunpack.c.h.b16 %v779
        %v1042 = vunpack.c.l.b16 %v780
        %v1043 = vunpack.c.h.b16 %v780
        %v1044 = vunpack.c.l.b16 %v781
        %v1045 = vunpack.c.h.b16 %v781
        %v1046 = vunpack.c.l.b16 %v782
        %v1047 = vunpack.c.h.b16 %v782
        %v1048 = vunpack.c.l.b16 %v783
        %v1049 = vunpack.c.h.b16 %v783
        %v1050 = vunpack.c.l.b16 %v784
        %v1051 = vunpack.c.h.b16 %v784
        %v1052 = vunpack.c.l.b16 %v785
        %v1053 = vunpack.c.h.b16 %v785
        %v1054 = vunpack.c.l.b16 %v786
        %v1055 = vunpack.c.h.b16 %v786
        %v1056 = vunpack.c.l.b16 %v787
        %v1057 = vunpack.c.h.b16 %v787
        %v1058 = vunpack.c.l.b16 %v788
        %v1059 = vunpack.c.h.b16 %v788
        %v1060 = vunpack.c.l.b16 %v789
        %v1061 = vunpack.c.h.b16 %v789
        %v1062 = vunpack.c.l.b16 %v790
        %v1063 = vunpack.c.h.b16 %v790
        %v1064 = vunpack.c.l.b16 %v791
        %v1065 = vunpack.c.h.b16 %v791
        %v1066 = vunpack.c.l.b16 %v792
        %v1067 = vunpack.c.h.b16 %v792
        %v1068 = vunpack.c.l.b16 %v793
        %v1069 = vunpack.c.h.b16 %v793
        %v1070 = vunpack.c.l.b16 %v794
        %v1071 = vunpack.c.h.b16 %v794
        %v1072 = vunpack.c.l.b16 %v795
        %v1073 = vunpack.c.h.b16 %v795
        %v1074 = vunpack.c.l.b16 %v796
        %v1075 = vunpack.c.h.b16 %v796
        %v1076 = vunpack.c.l.b16 %v797
        %v1077 = vunpack.c.h.b16 %v797
        %v1078 = vunpack.c.l.b16 %v798
        %v1079 = vunpack.c.h.b16 %v798
        %v1080 = vunpack.c.l.b16 %v799
        %v1081 = vunpack.c.h.b16 %v799
        %v1082 = vunpack.c.l.b16 %v800
        %v1083 = vunpack.c.h.b16 %v800
        %v1084 = vunpack.c.l.b16 %v801
        %v1085 = vunpack.c.h.b16 %v801
        %v1086 = vunpack.c.l.b16 %v802
        %v1087 = vunpack.c.h.b16 %v802
        %v1088 = vunpack.c.l.b16 %v803
        %v1089 = vunpack.c.h.b16 %v803
        %v1090 = vunpack.c.l.b16 %v804
        %v1091 = vunpack.c.h.b16 %v804
        %v1092 = vunpack.c.l.b16 %v805
        %v1093 = vunpack.c.h.b16 %v805
        %v1094 = vunpack.c.l.b16 %v806
        %v1095 = vunpack.c.h.b16 %v806
        %v1096 = vunpack.c.l.b16 %v807
        %v1097 = vunpack.c.h.b16 %v807
        %v1098 = vunpack.c.l.b16 %v808
        %v1099 = vunpack.c.h.b16 %v808
        %v1100 = vunpack.c.l.b16 %v809
        %v1101 = vunpack.c.h.b16 %v809
        %v1102 = vunpack.c.l.b16 %v810
        %v1103 = vunpack.c.h.b16 %v810
        %v1104 = vunpack.c.l.b16 %v811
        %v1105 = vunpack.c.h.b16 %v811
        %v1106 = vunpack.c.l.b16 %v812
        %v1107 = vunpack.c.h.b16 %v812
        %v1108 = vunpack.c.l.b16 %v813
        %v1109 = vunpack.c.h.b16 %v813
        %v1110 = vunpack.c.l.b16 %v814
        %v1111 = vunpack.c.h.b16 %v814
        %v1112 = vunpack.c.l.b16 %v815
        %v1113 = vunpack.c.h.b16 %v815
        %v1114 = vunpack.c.l.b16 %v816
        %v1115 = vunpack.c.h.b16 %v816
        %v1116 = vunpack.c.l.b16 %v817
        %v1117 = vunpack.c.h.b16 %v817
        %v1118 = vunpack.c.l.b16 %v818
        %v1119 = vunpack.c.h.b16 %v818
        %v1120 = vunpack.c.l.b16 %v819
        %v1121 = vunpack.c.h.b16 %v819
        %v1122 = vunpack.c.l.b16 %v820
        %v1123 = vunpack.c.h.b16 %v820
        %v1124 = vunpack.c.l.b16 %v821
        %v1125 = vunpack.c.h.b16 %v821
        %v1126 = vunpack.c.l.b16 %v822
        %v1127 = vunpack.c.h.b16 %v822
        %v1128 = vunpack.c.l.b16 %v823
        %v1129 = vunpack.c.h.b16 %v823
        %v1130 = vunpack.c.l.b16 %v824
        %v1131 = vunpack.c.h.b16 %v824
        %v1132 = vunpack.c.l.b16 %v825
        %v1133 = vunpack.c.h.b16 %v825
        %v1134 = vunpack.c.l.b16 %v826
        %v1135 = vunpack.c.h.b16 %v826
        %v1136 = vunpack.c.l.b16 %v827
        %v1137 = vunpack.c.h.b16 %v827
        %v1138 = vunpack.c.l.b16 %v828
        %v1139 = vunpack.c.h.b16 %v828
        %v1140 = vunpack.c.l.b16 %v829
        %v1141 = vunpack.c.h.b16 %v829
        %v1142 = vunpack.c.l.b16 %v830
        %v1143 = vunpack.c.h.b16 %v830
        %v1144 = vunpack.c.l.b16 %v831
        %v1145 = vunpack.c.h.b16 %v831
        %v1146 = vunpack.c.l.b16 %v832
        %v1147 = vunpack.c.h.b16 %v832
        %v1148 = vunpack.c.l.b16 %v833
        %v1149 = vunpack.c.h.b16 %v833
        %v1150 = vunpack.c.l.b16 %v834
        %v1151 = vunpack.c.h.b16 %v834
        %v1152 = vunpack.c.l.b16 %v835
        %v1153 = vunpack.c.h.b16 %v835
        %v1154 = vunpack.c.l.b16 %v836
        %v1155 = vunpack.c.h.b16 %v836
        %v1156 = vunpack.c.l.b16 %v837
        %v1157 = vunpack.c.h.b16 %v837
        %v1158 = vunpack.c.l.b16 %v838
        %v1159 = vunpack.c.h.b16 %v838
        %v1160 = vunpack.c.l.b16 %v839
        %v1161 = vunpack.c.h.b16 %v839
        %v1162 = vunpack.c.l.b16 %v840
        %v1163 = vunpack.c.h.b16 %v840
        %v1164 = vunpack.c.l.b16 %v841
        %v1165 = vunpack.c.h.b16 %v841
        %v1166 = vunpack.c.l.b16 %v842
        %v1167 = vunpack.c.h.b16 %v842
        %v1168 = vunpack.c.l.b16 %v843
        %v1169 = vunpack.c.h.b16 %v843
        %v1170 = vunpack.c.l.b16 %v844
        %v1171 = vunpack.c.h.b16 %v844
        %v1172 = vunpack.c.l.b16 %v845
        %v1173 = vunpack.c.h.b16 %v845
        %v1174 = vunpack.c.l.b16 %v846
        %v1175 = vunpack.c.h.b16 %v846
        %v1176 = vunpack.c.l.b16 %v847
        %v1177 = vunpack.c.h.b16 %v847
        %v1178 = vunpack.c.l.b16 %v848
        %v1179 = vunpack.c.h.b16 %v848
        %v1180 = vunpack.c.l.b16 %v849
        %v1181 = vunpack.c.h.b16 %v849
        %v1182 = vunpack.c.l.b16 %v850
        %v1183 = vunpack.c.h.b16 %v850
        %v1184 = vunpack.c.l.b16 %v851
        %v1185 = vunpack.c.h.b16 %v851
        %v1186 = vunpack.c.l.b16 %v852
        %v1187 = vunpack.c.h.b16 %v852
        %v1188 = vunpack.c.l.b16 %v853
        %v1189 = vunpack.c.h.b16 %v853
        %v1190 = vunpack.c.l.b16 %v854
        %v1191 = vunpack.c.h.b16 %v854
        %v1192 = vunpack.c.l.b16 %v855
        %v1193 = vunpack.c.h.b16 %v855
        %v1194 = vunpack.c.l.b16 %v856
        %v1195 = vunpack.c.h.b16 %v856
        %v1196 = vunpack.c.l.b16 %v857
        %v1197 = vunpack.c.h.b16 %v857
        %v1198 = vunpack.c.l.b16 %v858
        %v1199 = vunpack.c.h.b16 %v858
        %v1200 = vunpack.c.l.b16 %v859
        %v1201 = vunpack.c.h.b16 %v859
        %v1202 = vunpack.c.l.b16 %v860
        %v1203 = vunpack.c.h.b16 %v860
        %v1204 = vunpack.c.l.b16 %v861
        %v1205 = vunpack.c.h.b16 %v861
        %v1206 = vunpack.c.l.b16 %v862
        %v1207 = vunpack.c.h.b16 %v862
        %v1208 = vunpack.c.l.b16 %v863
        %v1209 = vunpack.c.h.b16 %v863
        %v1210 = vunpack.c.l.b16 %v864
        %v1211 = vunpack.c.h.b16 %v864
        %v1212 = vunpack.c.l.b16 %v865
        %v1213 = vunpack.c.h.b16 %v865
        %v1214 = vunpack.c.l.b16 %v866
        %v1215 = vunpack.c.h.b16 %v866
        %v1216 = vunpack.c.l.b16 %v867
        %v1217 = vunpack.c.h.b16 %v867
        %v1218 = vunpack.c.l.b16 %v868
        %v1219 = vunpack.c.h.b16 %v868
        %v1220 = vunpack.c.l.b16 %v869
        %v1221 = vunpack.c.h.b16 %v869
        %v1222 = vunpack.c.l.b16 %v870
        %v1223 = vunpack.c.h.b16 %v870
        %v1224 = vunpack.c.l.b16 %v871
        %v1225 = vunpack.c.h.b16 %v871
        %v1226 = vunpack.c.l.b16 %v872
        %v1227 = vunpack.c.h.b16 %v872
        %v1228 = vunpack.c.l.b16 %v873
        %v1229 = vunpack.c.h.b16 %v873
        %v1230 = vunpack.c.l.b16 %v874
        %v1231 = vunpack.c.h.b16 %v874
        %v1232 = vunpack.c.l.b16 %v875
        %v1233 = vunpack.c.h.b16 %v875
        %v1234 = vunpack.c.l.b16 %v876
        %v1235 = vunpack.c.h.b16 %v876
        %v1236 = vunpack.c.l.b16 %v877
        %v1237 = vunpack.c.h.b16 %v877
        %v1238 = vunpack.c.l.b16 %v878
        %v1239 = vunpack.c.h.b16 %v878
        %v1240 = vunpack.c.l.b16 %v879
        %v1241 = vunpack.c.h.b16 %v879
        %v1242 = vunpack.c.l.b16 %v880
        %v1243 = vunpack.c.h.b16 %v880
        %v1244 = vunpack.c.l.b16 %v881
        %v1245 = vunpack.c.h.b16 %v881
        %v1246 = vunpack.c.l.b16 %v882
        %v1247 = vunpack.c.h.b16 %v882
        %v1248 = vunpack.c.l.b16 %v883
        %v1249 = vunpack.c.h.b16 %v883
        %v1250 = vunpack.c.l.b16 %v884
        %v1251 = vunpack.c.h.b16 %v884
        %v1252 = vunpack.c.l.b16 %v885
        %v1253 = vunpack.c.h.b16 %v885
        %v1254 = vunpack.c.l.b16 %v886
        %v1255 = vunpack.c.h.b16 %v886
        %v1256 = vunpack.c.l.b16 %v887
        %v1257 = vunpack.c.h.b16 %v887
        %v1258 = vunpack.c.l.b16 %v888
        %v1259 = vunpack.c.h.b16 %v888
        %v1260 = vunpack.c.l.b16 %v889
        %v1261 = vunpack.c.h.b16 %v889
        %v1262 = vunpack.c.l.b16 %v890
        %v1263 = vunpack.c.h.b16 %v890
        %v1264 = vunpack.c.l.b16 %v891
        %v1265 = vunpack.c.h.b16 %v891
        %v1266 = vunpack.c.l.b16 %v892
        %v1267 = vunpack.c.h.b16 %v892
        %v1268 = vunpack.c.l.b16 %v893
        %v1269 = vunpack.c.h.b16 %v893
        %v1270 = vunpack.c.l.b16 %v894
        %v1271 = vunpack.c.h.b16 %v894
        %v1272 = vunpack.c.l.b16 %v895
        %v1273 = vunpack.c.h.b16 %v895
        %v1274 = vunpack.c.l.b16 %v896
        %v1275 = vunpack.c.h.b16 %v896
        %v1276 = vunpack.c.l.b16 %v897
        %v1277 = vunpack.c.h.b16 %v897
        %v1278 = vunpack.c.l.b16 %v898
        %v1279 = vunpack.c.h.b16 %v898
        %v1280 = vunpack.c.l.b16 %v899
        %v1281 = vunpack.c.h.b16 %v899
        %v1282 = vunpack.c.l.b16 %v900
        %v1283 = vunpack.c.h.b16 %v900
        %v1284 = vunpack.c.l.b16 %v901
        %v1285 = vunpack.c.h.b16 %v901
        %v1286 = vpack.c.b16 %v1034, %v1030
        %v1287 = vpack.c.b16 %v1035, %v1031
        %v1288 = vpack.c.b16 %v1036, %v1032
        %v1289 = vpack.c.b16 %v1037, %v1033
        %v1290 = vpack.c.b16 %v1042, %v1038
        %v1291 = vpack.c.b16 %v1043, %v1039
        %v1292 = vpack.c.b16 %v1044, %v1040
        %v1293 = vpack.c.b16 %v1045, %v1041
        %v1294 = vpack.c.b16 %v1050, %v1046
        %v1295 = vpack.c.b16 %v1051, %v1047
        %v1296 = vpack.c.b16 %v1052, %v1048
        %v1297 = vpack.c.b16 %v1053, %v1049
        %v1298 = vpack.c.b16 %v1058, %v1054
        %v1299 = vpack.c.b16 %v1059, %v1055
        %v1300 = vpack.c.b16 %v1060, %v1056
        %v1301 = vpack.c.b16 %v1061, %v1057
        %v1302 = vpack.c.b16 %v1066, %v1062
        %v1303 = vpack.c.b16 %v1067, %v1063
        %v1304 = vpack.c.b16 %v1068, %v1064
        %v1305 = vpack.c.b16 %v1069, %v1065
        %v1306 = vpack.c.b16 %v1074, %v1070
        %v1307 = vpack.c.b16 %v1075, %v1071
        %v1308 = vpack.c.b16 %v1076, %v1072
        %v1309 = vpack.c.b16 %v1077, %v1073
        %v1310 = vpack.c.b16 %v1082, %v1078
        %v1311 = vpack.c.b16 %v1083, %v1079
        %v1312 = vpack.c.b16 %v1084, %v1080
        %v1313 = vpack.c.b16 %v1085, %v1081
        %v1314 = vpack.c.b16 %v1090, %v1086
        %v1315 = vpack.c.b16 %v1091, %v1087
        %v1316 = vpack.c.b16 %v1092, %v1088
        %v1317 = vpack.c.b16 %v1093, %v1089
        %v1318 = vpack.c.b16 %v1098, %v1094
        %v1319 = vpack.c.b16 %v1099, %v1095
        %v1320 = vpack.c.b16 %v1100, %v1096
        %v1321 = vpack.c.b16 %v1101, %v1097
        %v1322 = vpack.c.b16 %v1106, %v1102
        %v1323 = vpack.c.b16 %v1107, %v1103
        %v1324 = vpack.c.b16 %v1108, %v1104
        %v1325 = vpack.c.b16 %v1109, %v1105
        %v1326 = vpack.c.b16 %v1114, %v1110
        %v1327 = vpack.c.b16 %v1115, %v1111
        %v1328 = vpack.c.b16 %v1116, %v1112
        %v1329 = vpack.c.b16 %v1117, %v1113
        %v1330 = vpack.c.b16 %v1122, %v1118
        %v1331 = vpack.c.b16 %v1123, %v1119
        %v1332 = vpack.c.b16 %v1124, %v1120
        %v1333 = vpack.c.b16 %v1125, %v1121
        %v1334 = vpack.c.b16 %v1130, %v1126
        %v1335 = vpack.c.b16 %v1131, %v1127
        %v1336 = vpack.c.b16 %v1132, %v1128
        %v1337 = vpack.c.b16 %v1133, %v1129
        %v1338 = vpack.c.b16 %v1138, %v1134
        %v1339 = vpack.c.b16 %v1139, %v1135
        %v1340 = vpack.c.b16 %v1140, %v1136
        %v1341 = vpack.c.b16 %v1141, %v1137
        %v1342 = vpack.c.b16 %v1146, %v1142
        %v1343 = vpack.c.b16 %v1147, %v1143
        %v1344 = vpack.c.b16 %v1148, %v1144
        %v1345 = vpack.c.b16 %v1149, %v1145
        %v1346 = vpack.c.b16 %v1154, %v1150
        %v1347 = vpack.c.b16 %v1155, %v1151
        %v1348 = vpack.c.b16 %v1156, %v1152
        %v1349 = vpack.c.b16 %v1157, %v1153
        %v1350 = vpack.c.b16 %v1162, %v1158
        %v1351 = vpack.c.b16 %v1163, %v1159
        %v1352 = vpack.c.b16 %v1164, %v1160
        %v1353 = vpack.c.b16 %v1165, %v1161
        %v1354 = vpack.c.b16 %v1170, %v1166
        %v1355 = vpack.c.b16 %v1171, %v1167
        %v1356 = vpack.c.b16 %v1172, %v1168
        %v1357 = vpack.c.b16 %v1173, %v1169
        %v1358 = vpack.c.b16 %v1178, %v1174
        %v1359 = vpack.c.b16 %v1179, %v1175
        %v1360 = vpack.c.b16 %v1180, %v1176
        %v1361 = vpack.c.b16 %v1181, %v1177
        %v1362 = vpack.c.b16 %v1186, %v1182
        %v1363 = vpack.c.b16 %v1187, %v1183
        %v1364 = vpack.c.b16 %v1188, %v1184
        %v1365 = vpack.c.b16 %v1189, %v1185
        %v1366 = vpack.c.b16 %v1194, %v1190
        %v1367 = vpack.c.b16 %v1195, %v1191
        %v1368 = vpack.c.b16 %v1196, %v1192
        %v1369 = vpack.c.b16 %v1197, %v1193
        %v1370 = vpack.c.b16 %v1202, %v1198
        %v1371 = vpack.c.b16 %v1203, %v1199
        %v1372 = vpack.c.b16 %v1204, %v1200
        %v1373 = vpack.c.b16 %v1205, %v1201
        %v1374 = vpack.c.b16 %v1210, %v1206
        %v1375 = vpack.c.b16 %v1211, %v1207
        %v1376 = vpack.c.b16 %v1212, %v1208
        %v1377 = vpack.c.b16 %v1213, %v1209
        %v1378 = vpack.c.b16 %v1218, %v1214
        %v1379 = vpack.c.b16 %v1219, %v1215
        %v1380 = vpack.c.b16 %v1220, %v1216
        %v1381 = vpack.c.b16 %v1221, %v1217
        %v1382 = vpack.c.b16 %v1226, %v1222
        %v1383 = vpack.c.b16 %v1227, %v1223
        %v1384 = vpack.c.b16 %v1228, %v1224
        %v1385 = vpack.c.b16 %v1229, %v1225
        %v1386 = vpack.c.b16 %v1234, %v1230
        %v1387 = vpack.c.b16 %v1235, %v1231
        %v1388 = vpack.c.b16 %v1236, %v1232
        %v1389 = vpack.c.b16 %v1237, %v1233
        %v1390 = vpack.c.b16 %v1242, %v1238
        %v1391 = vpack.c.b16 %v1243, %v1239
        %v1392 = vpack.c.b16 %v1244, %v1240
        %v1393 = vpack.c.b16 %v1245, %v1241
        %v1394 = vpack.c.b16 %v1250, %v1246
        %v1395 = vpack.c.b16 %v1251, %v1247
        %v1396 = vpack.c.b16 %v1252, %v1248
        %v1397 = vpack.c.b16 %v1253, %v1249
        %v1398 = vpack.c.b16 %v1258, %v1254
        %v1399 = vpack.c.b16 %v1259, %v1255
        %v1400 = vpack.c.b16 %v1260, %v1256
        %v1401 = vpack.c.b16 %v1261, %v1257
        %v1402 = vpack.c.b16 %v1266, %v1262
        %v1403 = vpack.c.b16 %v1267, %v1263
        %v1404 = vpack.c.b16 %v1268, %v1264
        %v1405 = vpack.c.b16 %v1269, %v1265
        %v1406 = vpack.c.b16 %v1274, %v1270
        %v1407 = vpack.c.b16 %v1275, %v1271
        %v1408 = vpack.c.b16 %v1276, %v1272
        %v1409 = vpack.c.b16 %v1277, %v1273
        %v1410 = vpack.c.b16 %v1282, %v1278
        %v1411 = vpack.c.b16 %v1283, %v1279
        %v1412 = vpack.c.b16 %v1284, %v1280
        %v1413 = vpack.c.b16 %v1285, %v1281
        %1542 = vmatprep.subr.bf16.mxu0 %v1287
        %1543 = vmatpush1.bf16.msra.mxu0 %v1286
        %1544 = vmatprep.subr.bf16.mxu0 %v1291
        %1545 = vmatpush1.bf16.msra.mxu0 %v1290
        %1546 = vmatprep.subr.bf16.mxu0 %v1295
        %1547 = vmatpush1.bf16.msra.mxu0 %v1294
        %1548 = vmatprep.subr.bf16.mxu0 %v1299
        %1549 = vmatpush1.bf16.msra.mxu0 %v1298
        %1550 = vmatprep.subr.bf16.mxu0 %v1303
        %1551 = vmatpush1.bf16.msra.mxu0 %v1302
        %1552 = vmatprep.subr.bf16.mxu0 %v1307
        %1553 = vmatpush1.bf16.msra.mxu0 %v1306
        %1554 = vmatprep.subr.bf16.mxu0 %v1311
        %1555 = vmatpush1.bf16.msra.mxu0 %v1310
        %1556 = vmatprep.subr.bf16.mxu0 %v1315
        %1557 = vmatpush1.bf16.msra.mxu0 %v1314
        %1558 = vmatprep.subr.bf16.mxu0 %v1319
        %1559 = vmatpush1.bf16.msra.mxu0 %v1318
        %1560 = vmatprep.subr.bf16.mxu0 %v1323
        %1561 = vmatpush1.bf16.msra.mxu0 %v1322
        %1562 = vmatprep.subr.bf16.mxu0 %v1327
        %1563 = vmatpush1.bf16.msra.mxu0 %v1326
        %1564 = vmatprep.subr.bf16.mxu0 %v1331
        %1565 = vmatpush1.bf16.msra.mxu0 %v1330
        %1566 = vmatprep.subr.bf16.mxu0 %v1335
        %1567 = vmatpush1.bf16.msra.mxu0 %v1334
        %1568 = vmatprep.subr.bf16.mxu0 %v1339
        %1569 = vmatpush1.bf16.msra.mxu0 %v1338
        %1570 = vmatprep.subr.bf16.mxu0 %v1343
        %1571 = vmatpush1.bf16.msra.mxu0 %v1342
        %1572 = vmatprep.subr.bf16.mxu0 %v1347
        %1573 = vmatpush1.bf16.msra.mxu0 %v1346
        %1574 = vmatprep.mubr.bf16.mxu0 %v771
        %1575 = vmatmul.mubr.bf16.gmra.mrb[0].mxu0 %v770
        %v1576 = vpop.f32.mrb[0].mxu0
        %v1577 = vadd.f32 0.0, %v1576
        %v1578 = vpop.f32.mrb[0].mxu0
        %v1579 = vadd.f32 0.0, %v1578
        %v1580 = vpop.f32.mrb[0].mxu0
        %v1581 = vpop.f32.mrb[0].mxu0
        %1582 = vdwg.mxu0
        %1583 = vmatprep.subr.bf16.mxu0 %v1351
        %1584 = vmatpush1.bf16.msra.mxu0 %v1350
        %1585 = vmatprep.subr.bf16.mxu0 %v1355
        %1586 = vmatpush1.bf16.msra.mxu0 %v1354
        %1587 = vmatprep.subr.bf16.mxu0 %v1359
        %1588 = vmatpush1.bf16.msra.mxu0 %v1358
        %1589 = vmatprep.subr.bf16.mxu0 %v1363
        %1590 = vmatpush1.bf16.msra.mxu0 %v1362
        %1591 = vmatprep.subr.bf16.mxu0 %v1367
        %1592 = vmatpush1.bf16.msra.mxu0 %v1366
        %1593 = vmatprep.subr.bf16.mxu0 %v1371
        %1594 = vmatpush1.bf16.msra.mxu0 %v1370
        %1595 = vmatprep.subr.bf16.mxu0 %v1375
        %1596 = vmatpush1.bf16.msra.mxu0 %v1374
        %1597 = vmatprep.subr.bf16.mxu0 %v1379
        %1598 = vmatpush1.bf16.msra.mxu0 %v1378
        %1599 = vmatprep.subr.bf16.mxu0 %v1383
        %1600 = vmatpush1.bf16.msra.mxu0 %v1382
        %1601 = vmatprep.subr.bf16.mxu0 %v1387
        %1602 = vmatpush1.bf16.msra.mxu0 %v1386
        %1603 = vmatprep.subr.bf16.mxu0 %v1391
        %1604 = vmatpush1.bf16.msra.mxu0 %v1390
        %1605 = vmatprep.subr.bf16.mxu0 %v1395
        %1606 = vmatpush1.bf16.msra.mxu0 %v1394
        %1607 = vmatprep.subr.bf16.mxu0 %v1399
        %1608 = vmatpush1.bf16.msra.mxu0 %v1398
        %1609 = vmatprep.subr.bf16.mxu0 %v1403
        %1610 = vmatpush1.bf16.msra.mxu0 %v1402
        %1611 = vmatprep.subr.bf16.mxu0 %v1407
        %1612 = vmatpush1.bf16.msra.mxu0 %v1406
        %1613 = vmatprep.subr.bf16.mxu0 %v1411
        %1614 = vmatpush1.bf16.msra.mxu0 %v1410
        %1615 = vmatprep.mubr.bf16.mxu0 %v773
        %1616 = vmatmul.mubr.bf16.gmra.mrb[0].mxu0 %v772
        %v1617 = vpop.f32.mrb[0].mxu0
        %v1618 = vadd.f32 %v1577, %v1617
        %v1619 = vpop.f32.mrb[0].mxu0
        %v1620 = vadd.f32 %v1579, %v1619
        %v1621 = vpop.f32.mrb[0].mxu0
        %v1622 = vpop.f32.mrb[0].mxu0
        %1623 = vdwg.mxu0
        %1624 = vmatprep.subr.bf16.mxu0 %v1289
        %1625 = vmatpush1.bf16.msra.mxu0 %v1288
        %1626 = vmatprep.subr.bf16.mxu0 %v1293
        %1627 = vmatpush1.bf16.msra.mxu0 %v1292
        %1628 = vmatprep.subr.bf16.mxu0 %v1297
        %1629 = vmatpush1.bf16.msra.mxu0 %v1296
        %1630 = vmatprep.subr.bf16.mxu0 %v1301
        %1631 = vmatpush1.bf16.msra.mxu0 %v1300
        %1632 = vmatprep.subr.bf16.mxu0 %v1305
        %1633 = vmatpush1.bf16.msra.mxu0 %v1304
        %1634 = vmatprep.subr.bf16.mxu0 %v1309
        %1635 = vmatpush1.bf16.msra.mxu0 %v1308
        %1636 = vmatprep.subr.bf16.mxu0 %v1313
        %1637 = vmatpush1.bf16.msra.mxu0 %v1312
        %1638 = vmatprep.subr.bf16.mxu0 %v1317
        %1639 = vmatpush1.bf16.msra.mxu0 %v1316
        %1640 = vmatprep.subr.bf16.mxu0 %v1321
        %1641 = vmatpush1.bf16.msra.mxu0 %v1320
        %1642 = vmatprep.subr.bf16.mxu0 %v1325
        %1643 = vmatpush1.bf16.msra.mxu0 %v1324
        %1644 = vmatprep.subr.bf16.mxu0 %v1329
        %1645 = vmatpush1.bf16.msra.mxu0 %v1328
        %1646 = vmatprep.subr.bf16.mxu0 %v1333
        %1647 = vmatpush1.bf16.msra.mxu0 %v1332
        %1648 = vmatprep.subr.bf16.mxu0 %v1337
        %1649 = vmatpush1.bf16.msra.mxu0 %v1336
        %1650 = vmatprep.subr.bf16.mxu0 %v1341
        %1651 = vmatpush1.bf16.msra.mxu0 %v1340
        %1652 = vmatprep.subr.bf16.mxu0 %v1345
        %1653 = vmatpush1.bf16.msra.mxu0 %v1344
        %1654 = vmatprep.subr.bf16.mxu0 %v1349
        %1655 = vmatpush1.bf16.msra.mxu0 %v1348
        %1656 = vmatprep.mubr.bf16.mxu0 %v771
        %1657 = vmatmul.mubr.bf16.gmra.mrb[0].mxu0 %v770
        %v1658 = vpop.f32.mrb[0].mxu0
        %v1659 = vadd.f32 0.0, %v1658
        %v1660 = vpop.f32.mrb[0].mxu0
        %v1661 = vadd.f32 0.0, %v1660
        %v1662 = vpop.f32.mrb[0].mxu0
        %v1663 = vpop.f32.mrb[0].mxu0
        %1664 = vdwg.mxu0
        %1665 = vmatprep.subr.bf16.mxu0 %v1353
        %1666 = vmatpush1.bf16.msra.mxu0 %v1352
        %1667 = vmatprep.subr.bf16.mxu0 %v1357
        %1668 = vmatpush1.bf16.msra.mxu0 %v1356
        %1669 = vmatprep.subr.bf16.mxu0 %v1361
        %1670 = vmatpush1.bf16.msra.mxu0 %v1360
        %1671 = vmatprep.subr.bf16.mxu0 %v1365
        %1672 = vmatpush1.bf16.msra.mxu0 %v1364
        %1673 = vmatprep.subr.bf16.mxu0 %v1369
        %1674 = vmatpush1.bf16.msra.mxu0 %v1368
        %1675 = vmatprep.subr.bf16.mxu0 %v1373
        %1676 = vmatpush1.bf16.msra.mxu0 %v1372
        %1677 = vmatprep.subr.bf16.mxu0 %v1377
        %1678 = vmatpush1.bf16.msra.mxu0 %v1376
        %1679 = vmatprep.subr.bf16.mxu0 %v1381
        %1680 = vmatpush1.bf16.msra.mxu0 %v1380
        %1681 = vmatprep.subr.bf16.mxu0 %v1385
        %1682 = vmatpush1.bf16.msra.mxu0 %v1384
        %1683 = vmatprep.subr.bf16.mxu0 %v1389
        %1684 = vmatpush1.bf16.msra.mxu0 %v1388
        %1685 = vmatprep.subr.bf16.mxu0 %v1393
        %1686 = vmatpush1.bf16.msra.mxu0 %v1392
        %1687 = vmatprep.subr.bf16.mxu0 %v1397
        %1688 = vmatpush1.bf16.msra.mxu0 %v1396
        %1689 = vmatprep.subr.bf16.mxu0 %v1401
        %1690 = vmatpush1.bf16.msra.mxu0 %v1400
        %1691 = vmatprep.subr.bf16.mxu0 %v1405
        %1692 = vmatpush1.bf16.msra.mxu0 %v1404
        %1693 = vmatprep.subr.bf16.mxu0 %v1409
        %1694 = vmatpush1.bf16.msra.mxu0 %v1408
        %1695 = vmatprep.subr.bf16.mxu0 %v1413
        %1696 = vmatpush1.bf16.msra.mxu0 %v1412
        %1697 = vmatprep.mubr.bf16.mxu0 %v773
        %1698 = vmatmul.mubr.bf16.gmra.mrb[0].mxu0 %v772
        %v1699 = vpop.f32.mrb[0].mxu0
        %v1700 = vadd.f32 %v1659, %v1699
        %v1701 = vpop.f32.mrb[0].mxu0
        %v1702 = vadd.f32 %v1661, %v1701
        %v1703 = vpop.f32.mrb[0].mxu0
        %v1704 = vpop.f32.mrb[0].mxu0
        %1705 = vdwg.mxu0
        %v1706 = vmax.f32 %v1618, 0.0
        %v1707 = vmax.f32 %v1620, 0.0
        %v1708 = vmax.f32 %v1700, 0.0
        %v1709 = vmax.f32 %v1702, 0.0
        %v1710 = vmul.f32 %v541, %v1706
        %v1711 = vmul.f32 %v543, %v1707
        %v1712 = vmul.f32 %v582, %v1708
        %v1713 = vmul.f32 %v584, %v1709
        %v1714 = vpack.c.bf16 %v1710, %v1710
        %v1715 = vpack.c.bf16 %v1711, %v1711
        %v1716 = vpack.c.bf16 %v1712, %v1712
        %v1717 = vpack.c.bf16 %v1713, %v1713
        %v1718 = vld [vmem:[#allocation7] sm:$0xf]
        %v1719 = vld [vmem:[#allocation7 + $0x4] sm:$0xf]
        %v1720 = vld [vmem:[#allocation7 + $0x8] sm:$0xf]
        %v1721 = vld [vmem:[#allocation7 + $0xc] sm:$0xf]
        %v1722 = vld [vmem:[#allocation7 + $0x10] sm:$0xf]
        %v1723 = vld [vmem:[#allocation7 + $0x14] sm:$0xf]
        %v1724 = vld [vmem:[#allocation7 + $0x18] sm:$0xf]
        %v1725 = vld [vmem:[#allocation7 + $0x1c] sm:$0xf]
        %v1726 = vld [vmem:[#allocation7 + $0x20] sm:$0xf]
        %v1727 = vld [vmem:[#allocation7 + $0x24] sm:$0xf]
        %v1728 = vld [vmem:[#allocation7 + $0x28] sm:$0xf]
        %v1729 = vld [vmem:[#allocation7 + $0x2c] sm:$0xf]
        %v1730 = vld [vmem:[#allocation7 + $0x30] sm:$0xf]
        %v1731 = vld [vmem:[#allocation7 + $0x34] sm:$0xf]
        %v1732 = vld [vmem:[#allocation7 + $0x38] sm:$0xf]
        %v1733 = vld [vmem:[#allocation7 + $0x3c] sm:$0xf]
        %v1734 = vld [vmem:[#allocation7 + $0x40] sm:$0xf]
        %v1735 = vld [vmem:[#allocation7 + $0x44] sm:$0xf]
        %v1736 = vld [vmem:[#allocation7 + $0x48] sm:$0xf]
        %v1737 = vld [vmem:[#allocation7 + $0x4c] sm:$0xf]
        %v1738 = vld [vmem:[#allocation7 + $0x50] sm:$0xf]
        %v1739 = vld [vmem:[#allocation7 + $0x54] sm:$0xf]
        %v1740 = vld [vmem:[#allocation7 + $0x58] sm:$0xf]
        %v1741 = vld [vmem:[#allocation7 + $0x5c] sm:$0xf]
        %v1742 = vld [vmem:[#allocation7 + $0x60] sm:$0xf]
        %v1743 = vld [vmem:[#allocation7 + $0x64] sm:$0xf]
        %v1744 = vld [vmem:[#allocation7 + $0x68] sm:$0xf]
        %v1745 = vld [vmem:[#allocation7 + $0x6c] sm:$0xf]
        %v1746 = vld [vmem:[#allocation7 + $0x70] sm:$0xf]
        %v1747 = vld [vmem:[#allocation7 + $0x74] sm:$0xf]
        %v1748 = vld [vmem:[#allocation7 + $0x78] sm:$0xf]
        %v1749 = vld [vmem:[#allocation7 + $0x7c] sm:$0xf]
        %v1750 = vld [vmem:[#allocation7 + $0x80] sm:$0xf]
        %v1751 = vld [vmem:[#allocation7 + $0x84] sm:$0xf]
        %v1752 = vld [vmem:[#allocation7 + $0x88] sm:$0xf]
        %v1753 = vld [vmem:[#allocation7 + $0x8c] sm:$0xf]
        %v1754 = vld [vmem:[#allocation7 + $0x90] sm:$0xf]
        %v1755 = vld [vmem:[#allocation7 + $0x94] sm:$0xf]
        %v1756 = vld [vmem:[#allocation7 + $0x98] sm:$0xf]
        %v1757 = vld [vmem:[#allocation7 + $0x9c] sm:$0xf]
        %v1758 = vld [vmem:[#allocation7 + $0xa0] sm:$0xf]
        %v1759 = vld [vmem:[#allocation7 + $0xa4] sm:$0xf]
        %v1760 = vld [vmem:[#allocation7 + $0xa8] sm:$0xf]
        %v1761 = vld [vmem:[#allocation7 + $0xac] sm:$0xf]
        %v1762 = vld [vmem:[#allocation7 + $0xb0] sm:$0xf]
        %v1763 = vld [vmem:[#allocation7 + $0xb4] sm:$0xf]
        %v1764 = vld [vmem:[#allocation7 + $0xb8] sm:$0xf]
        %v1765 = vld [vmem:[#allocation7 + $0xbc] sm:$0xf]
        %v1766 = vld [vmem:[#allocation7 + $0xc0] sm:$0xf]
        %v1767 = vld [vmem:[#allocation7 + $0xc4] sm:$0xf]
        %v1768 = vld [vmem:[#allocation7 + $0xc8] sm:$0xf]
        %v1769 = vld [vmem:[#allocation7 + $0xcc] sm:$0xf]
        %v1770 = vld [vmem:[#allocation7 + $0xd0] sm:$0xf]
        %v1771 = vld [vmem:[#allocation7 + $0xd4] sm:$0xf]
        %v1772 = vld [vmem:[#allocation7 + $0xd8] sm:$0xf]
        %v1773 = vld [vmem:[#allocation7 + $0xdc] sm:$0xf]
        %v1774 = vld [vmem:[#allocation7 + $0xe0] sm:$0xf]
        %v1775 = vld [vmem:[#allocation7 + $0xe4] sm:$0xf]
        %v1776 = vld [vmem:[#allocation7 + $0xe8] sm:$0xf]
        %v1777 = vld [vmem:[#allocation7 + $0xec] sm:$0xf]
        %v1778 = vld [vmem:[#allocation7 + $0xf0] sm:$0xf]
        %v1779 = vld [vmem:[#allocation7 + $0xf4] sm:$0xf]
        %v1780 = vld [vmem:[#allocation7 + $0xf8] sm:$0xf]
        %v1781 = vld [vmem:[#allocation7 + $0xfc] sm:$0xf]
        %v1846 = vunpack.c.l.b16 %v1718
        %v1847 = vunpack.c.l.b16 %v1719
        %v1848 = vunpack.c.l.b16 %v1720
        %v1849 = vunpack.c.l.b16 %v1721
        %v1850 = vunpack.c.l.b16 %v1722
        %v1851 = vunpack.c.l.b16 %v1723
        %v1852 = vunpack.c.l.b16 %v1724
        %v1853 = vunpack.c.l.b16 %v1725
        %v1854 = vunpack.c.l.b16 %v1726
        %v1855 = vunpack.c.l.b16 %v1727
        %v1856 = vunpack.c.l.b16 %v1728
        %v1857 = vunpack.c.l.b16 %v1729
        %v1858 = vunpack.c.l.b16 %v1730
        %v1859 = vunpack.c.l.b16 %v1731
        %v1860 = vunpack.c.l.b16 %v1732
        %v1861 = vunpack.c.l.b16 %v1733
        %v1862 = vunpack.c.l.b16 %v1734
        %v1863 = vunpack.c.l.b16 %v1735
        %v1864 = vunpack.c.l.b16 %v1736
        %v1865 = vunpack.c.l.b16 %v1737
        %v1866 = vunpack.c.l.b16 %v1738
        %v1867 = vunpack.c.l.b16 %v1739
        %v1868 = vunpack.c.l.b16 %v1740
        %v1869 = vunpack.c.l.b16 %v1741
        %v1870 = vunpack.c.l.b16 %v1742
        %v1871 = vunpack.c.l.b16 %v1743
        %v1872 = vunpack.c.l.b16 %v1744
        %v1873 = vunpack.c.l.b16 %v1745
        %v1874 = vunpack.c.l.b16 %v1746
        %v1875 = vunpack.c.l.b16 %v1747
        %v1876 = vunpack.c.l.b16 %v1748
        %v1877 = vunpack.c.l.b16 %v1749
        %v1878 = vunpack.c.l.b16 %v1750
        %v1879 = vunpack.c.l.b16 %v1751
        %v1880 = vunpack.c.l.b16 %v1752
        %v1881 = vunpack.c.l.b16 %v1753
        %v1882 = vunpack.c.l.b16 %v1754
        %v1883 = vunpack.c.l.b16 %v1755
        %v1884 = vunpack.c.l.b16 %v1756
        %v1885 = vunpack.c.l.b16 %v1757
        %v1886 = vunpack.c.l.b16 %v1758
        %v1887 = vunpack.c.l.b16 %v1759
        %v1888 = vunpack.c.l.b16 %v1760
        %v1889 = vunpack.c.l.b16 %v1761
        %v1890 = vunpack.c.l.b16 %v1762
        %v1891 = vunpack.c.l.b16 %v1763
        %v1892 = vunpack.c.l.b16 %v1764
        %v1893 = vunpack.c.l.b16 %v1765
        %v1894 = vunpack.c.l.b16 %v1766
        %v1895 = vunpack.c.l.b16 %v1767
        %v1896 = vunpack.c.l.b16 %v1768
        %v1897 = vunpack.c.l.b16 %v1769
        %v1898 = vunpack.c.l.b16 %v1770
        %v1899 = vunpack.c.l.b16 %v1771
        %v1900 = vunpack.c.l.b16 %v1772
        %v1901 = vunpack.c.l.b16 %v1773
        %v1902 = vunpack.c.l.b16 %v1774
        %v1903 = vunpack.c.l.b16 %v1775
        %v1904 = vunpack.c.l.b16 %v1776
        %v1905 = vunpack.c.l.b16 %v1777
        %v1906 = vunpack.c.l.b16 %v1778
        %v1907 = vunpack.c.l.b16 %v1779
        %v1908 = vunpack.c.l.b16 %v1780
        %v1909 = vunpack.c.l.b16 %v1781
        %v1910 = vpack.c.b16 %v1847, %v1846
        %v1911 = vpack.c.b16 %v1849, %v1848
        %v1912 = vpack.c.b16 %v1851, %v1850
        %v1913 = vpack.c.b16 %v1853, %v1852
        %v1914 = vpack.c.b16 %v1855, %v1854
        %v1915 = vpack.c.b16 %v1857, %v1856
        %v1916 = vpack.c.b16 %v1859, %v1858
        %v1917 = vpack.c.b16 %v1861, %v1860
        %v1918 = vpack.c.b16 %v1863, %v1862
        %v1919 = vpack.c.b16 %v1865, %v1864
        %v1920 = vpack.c.b16 %v1867, %v1866
        %v1921 = vpack.c.b16 %v1869, %v1868
        %v1922 = vpack.c.b16 %v1871, %v1870
        %v1923 = vpack.c.b16 %v1873, %v1872
        %v1924 = vpack.c.b16 %v1875, %v1874
        %v1925 = vpack.c.b16 %v1877, %v1876
        %v1926 = vpack.c.b16 %v1879, %v1878
        %v1927 = vpack.c.b16 %v1881, %v1880
        %v1928 = vpack.c.b16 %v1883, %v1882
        %v1929 = vpack.c.b16 %v1885, %v1884
        %v1930 = vpack.c.b16 %v1887, %v1886
        %v1931 = vpack.c.b16 %v1889, %v1888
        %v1932 = vpack.c.b16 %v1891, %v1890
        %v1933 = vpack.c.b16 %v1893, %v1892
        %v1934 = vpack.c.b16 %v1895, %v1894
        %v1935 = vpack.c.b16 %v1897, %v1896
        %v1936 = vpack.c.b16 %v1899, %v1898
        %v1937 = vpack.c.b16 %v1901, %v1900
        %v1938 = vpack.c.b16 %v1903, %v1902
        %v1939 = vpack.c.b16 %v1905, %v1904
        %v1940 = vpack.c.b16 %v1907, %v1906
        %v1941 = vpack.c.b16 %v1909, %v1908
        %1974 = vmatprep.subr.bf16.mxu0 0
        %1975 = vmatpush1.bf16.msra.mxu0 %v1910
        %1976 = vmatprep.subr.bf16.mxu0 0
        %1977 = vmatpush1.bf16.msra.mxu0 %v1911
        %1978 = vmatprep.subr.bf16.mxu0 0
        %1979 = vmatpush1.bf16.msra.mxu0 %v1912
        %1980 = vmatprep.subr.bf16.mxu0 0
        %1981 = vmatpush1.bf16.msra.mxu0 %v1913
        %1982 = vmatprep.subr.bf16.mxu0 0
        %1983 = vmatpush1.bf16.msra.mxu0 %v1914
        %1984 = vmatprep.subr.bf16.mxu0 0
        %1985 = vmatpush1.bf16.msra.mxu0 %v1915
        %1986 = vmatprep.subr.bf16.mxu0 0
        %1987 = vmatpush1.bf16.msra.mxu0 %v1916
        %1988 = vmatprep.subr.bf16.mxu0 0
        %1989 = vmatpush1.bf16.msra.mxu0 %v1917
        %1990 = vmatprep.subr.bf16.mxu0 0
        %1991 = vmatpush1.bf16.msra.mxu0 %v1918
        %1992 = vmatprep.subr.bf16.mxu0 0
        %1993 = vmatpush1.bf16.msra.mxu0 %v1919
        %1994 = vmatprep.subr.bf16.mxu0 0
        %1995 = vmatpush1.bf16.msra.mxu0 %v1920
        %1996 = vmatprep.subr.bf16.mxu0 0
        %1997 = vmatpush1.bf16.msra.mxu0 %v1921
        %1998 = vmatprep.subr.bf16.mxu0 0
        %1999 = vmatpush1.bf16.msra.mxu0 %v1922
        %2000 = vmatprep.subr.bf16.mxu0 0
        %2001 = vmatpush1.bf16.msra.mxu0 %v1923
        %2002 = vmatprep.subr.bf16.mxu0 0
        %2003 = vmatpush1.bf16.msra.mxu0 %v1924
        %2004 = vmatprep.subr.bf16.mxu0 0
        %2005 = vmatpush1.bf16.msra.mxu0 %v1925
        %2006 = vmatprep.mubr.bf16.mxu0 %v1715
        %2007 = vmatmul.mubr.bf16.gmra.mrb[0].mxu0 %v1714
        %v2008 = vpop.f32.mrb[0].mxu0
        %v2009 = vadd.f32 0.0, %v2008
        %v2010 = vpop.f32.mrb[0].mxu0
        %v2011 = vpop.f32.mrb[0].mxu0
        %v2012 = vpop.f32.mrb[0].mxu0
        %2013 = vdwg.mxu0
        %2014 = vmatprep.subr.bf16.mxu0 0
        %2015 = vmatpush1.bf16.msra.mxu0 %v1926
        %2016 = vmatprep.subr.bf16.mxu0 0
        %2017 = vmatpush1.bf16.msra.mxu0 %v1927
        %2018 = vmatprep.subr.bf16.mxu0 0
        %2019 = vmatpush1.bf16.msra.mxu0 %v1928
        %2020 = vmatprep.subr.bf16.mxu0 0
        %2021 = vmatpush1.bf16.msra.mxu0 %v1929
        %2022 = vmatprep.subr.bf16.mxu0 0
        %2023 = vmatpush1.bf16.msra.mxu0 %v1930
        %2024 = vmatprep.subr.bf16.mxu0 0
        %2025 = vmatpush1.bf16.msra.mxu0 %v1931
        %2026 = vmatprep.subr.bf16.mxu0 0
        %2027 = vmatpush1.bf16.msra.mxu0 %v1932
        %2028 = vmatprep.subr.bf16.mxu0 0
        %2029 = vmatpush1.bf16.msra.mxu0 %v1933
        %2030 = vmatprep.subr.bf16.mxu0 0
        %2031 = vmatpush1.bf16.msra.mxu0 %v1934
        %2032 = vmatprep.subr.bf16.mxu0 0
        %2033 = vmatpush1.bf16.msra.mxu0 %v1935
        %2034 = vmatprep.subr.bf16.mxu0 0
        %2035 = vmatpush1.bf16.msra.mxu0 %v1936
        %2036 = vmatprep.subr.bf16.mxu0 0
        %2037 = vmatpush1.bf16.msra.mxu0 %v1937
        %2038 = vmatprep.subr.bf16.mxu0 0
        %2039 = vmatpush1.bf16.msra.mxu0 %v1938
        %2040 = vmatprep.subr.bf16.mxu0 0
        %2041 = vmatpush1.bf16.msra.mxu0 %v1939
        %2042 = vmatprep.subr.bf16.mxu0 0
        %2043 = vmatpush1.bf16.msra.mxu0 %v1940
        %2044 = vmatprep.subr.bf16.mxu0 0
        %2045 = vmatpush1.bf16.msra.mxu0 %v1941
        %2046 = vmatprep.mubr.bf16.mxu0 %v1717
        %2047 = vmatmul.mubr.bf16.gmra.mrb[0].mxu0 %v1716
        %v2048 = vpop.f32.mrb[0].mxu0
        %v2049 = vadd.f32 %v2009, %v2048
        %v2050 = vpop.f32.mrb[0].mxu0
        %v2051 = vpop.f32.mrb[0].mxu0
        %v2052 = vpop.f32.mrb[0].mxu0
        %2053 = vdwg.mxu0
        %2054 = vst [vmem:[%s313] sm:$0xff] %v2049
        %s2055 = sand.u32 %s183, 1
        %s2056 = scalar_lea.sflag [#allocation4], %s2055
        %s2057 = sand.u32 %s183, 1
        %s2058 = smul.addr %s2057, 8
        %s2059 = scalar_lea.vmem [#allocation8], %s2058
        // Predicated region
        $region61: #{tpu_custom_call.1} parent=47 // pred_check
          %p2060 = pneg %p193
        $region62: #{tpu_custom_call.1} parent=47 // pred_check_branch
          %2062 = sbr.rel (%p2060) target = $region64
        $region63: #{tpu_custom_call.1} parent=47 // pred_region
          %s2064 = ssub.s32 128, 128
          %2065 = vsyncadd %s2056, %s2064
          %s2066 = smul.addr %s23, 128
          %s2067 = scalar_lea.hbm %s7, %s2066
          %s2069 = sshll.u32 %s2059, 4
          %s2070 = int_to_ptr.vmem [resolvable:$true] %s2069
          %2072 = dma.vmem_to_hbm [thread:$0]  %s2070, 128, %s2067, %s2056
        $region64: #{tpu_custom_call.1} parent=47 // pred_fallthru
          _
      $region48: #{tpu_custom_call.1} parent=5 // pred_fallthru
        _
      %p2073 = scmp.le.s32.totalorder 2, %s18
      // Predicated region
      $region65: #{tpu_custom_call.1} parent=5 // pred_check
        %p2074 = pneg %p2073
      $region66: #{tpu_custom_call.1} parent=5 // pred_check_branch
        %2076 = sbr.rel (%p2074) target = $region68
      $region67: #{tpu_custom_call.1} parent=5 // pred_region
        %s2077 = ssub.s32 %s18, 2
        // Predicated region
        $region69: #{tpu_custom_call.1} parent=67 // pred_check
          %p2078 = pneg %p199
        $region70: #{tpu_custom_call.1} parent=67 // pred_check_branch
          %2080 = sbr.rel (%p2078) target = $region72
        $region71: #{tpu_custom_call.1} parent=67 // pred_region
          %s2081 = sand.u32 %s184, 1
          %s2082 = scalar_lea.sflag [#allocation4], %s2081
          %s2083 = sand.u32 %s184, 1
          %s2084 = smul.addr %s2083, 8
          %s2085 = scalar_lea.vmem [#allocation8], %s2084
          %2086 = dma.done %s2082, 128
        $region72: #{tpu_custom_call.1} parent=67 // pred_fallthru
          _
      $region68: #{tpu_custom_call.1} parent=5 // pred_fallthru
        _
    $region6: #{tpu_custom_call.1} parent=1 // loop_footer
      %s22 = sadd.s32 1, %s18
    $region7: #{tpu_custom_call.1} parent=1 // loop_footer_branch
      %17 = sbr.rel target = $region3
    $region8: #{tpu_custom_call.1} parent=1 // loop_exit
      _
    %2087 = vsyncpa [#allocation3], 1
    %s2088 = scalar_lea.sflag [#allocation3], 1
    %2089 = vsyncpa %s2088, 1
    %2090 = vsyncpa [#allocation6], 1
    %2091 = vsyncpa [#allocation4], 1
    %s2092 = scalar_lea.sflag [#allocation4], 1
    %2093 = vsyncpa %s2092, 1

</llo_original>
